<compile_context>
chip_gen: v7x
topology: tpu7x:2x2x1
jax: 0.10.0
libtpu: 0.0.40
codegen_flags: <defaults>
</compile_context>

<pallas_src>
import functools

import jax
import jax.numpy as jnp
from jax.experimental import pallas as pl
from jax.experimental.pallas import tpu as pltpu  # noqa: F401  (TPU backend assumed)


# ---------------------------------------------------------------------------
# Fused Pallas kernel
# ---------------------------------------------------------------------------
def _fused_senti_lstm_kernel(n_layers, seq_len, batch, hidden, *refs):
    """Fused multi-layer LSTM + fc + sigmoid. Invoked once (no grid)."""
    it = iter(refs)
    xp0_ref = next(it)                                    # (T*B, 4H) f32 = x@W_ih[0] + b[0], g-cols prescaled
    w_step_refs = [next(it) for _ in range(n_layers)]     # bf16: (H, 8H) = [W_hh[l] | W_ih[l+1]] fused, or (H, 4H) for last layer
    b_refs = [None] + [next(it) for _ in range(n_layers - 1)]  # (1, 4H) f32, g-cols prescaled (layers >= 1)
    fc_w_ref = next(it)                                   # (H, O) f32 (tiny, run once)
    fc_b_ref = next(it)                                   # (1, O) f32
    h0_ref = next(it)                                     # (L, B, H) f32
    c0_ref = next(it)                                     # (L, B, H) f32
    sig_ref = next(it)                                    # (B, O)      output
    hn_ref = next(it)                                     # (L, B, H)   output
    cn_ref = next(it)                                     # (L, B, H)   output

    H = hidden
    four_h = 4 * H

    gin_rows = None   # per-timestep (B, 4H) f32 gate inputs of the current layer (layers >= 1)
    h = None
    for layer in range(n_layers):                         # static layer loop
        has_next = layer + 1 < n_layers
        w_step = w_step_refs[layer][...]                  # hoisted loop invariant (bf16)
        h = h0_ref[layer]                                 # (B, H) f32
        c = c0_ref[layer]
        next_rows = []

        for t in range(seq_len):      # tiny fixed trip count -> fully unrolled
            gin = (xp0_ref[t * batch:(t + 1) * batch, :] if layer == 0
                   else gin_rows[t])                      # bias already folded in
            # One bf16 MXU pass per step. For inner layers the right 4H output
            # columns are h_{t-1} @ W_ih[l+1] (the next layer's input
            # projection) and sit OFF the serial critical path.
            full = jnp.dot(h.astype(jnp.bfloat16), w_step,
                           preferred_element_type=jnp.float32)
            gates = gin + full[:, :four_h]
            # Single full-width sigmoid over the whole (B, 4H) block; the g
            # columns were pre-scaled by 2 outside, so tanh(g) = 2*sig(2g) - 1.
            s = jax.nn.sigmoid(gates)
            # PyTorch gate order: input, forget, cell(g), output.
            i_g = s[:, 0 * H:1 * H]
            f_g = s[:, 1 * H:2 * H]
            g_t = 2.0 * s[:, 2 * H:3 * H] - 1.0
            o_g = s[:, 3 * H:4 * H]
            c = f_g * c + i_g * g_t
            h = o_g * jnp.tanh(c)
            if has_next and t >= 1:
                next_rows.append(full[:, four_h:])        # next-layer gin, row t-1

        hn_ref[layer] = h
        cn_ref[layer] = c

        if has_next:
            # Tail row T-1 of the next layer's input projection (reuse the
            # fused weight; the unused left half is off the critical path).
            tail = jnp.dot(h.astype(jnp.bfloat16), w_step,
                           preferred_element_type=jnp.float32)[:, four_h:]
            next_rows.append(tail)
            bias_next = jnp.broadcast_to(b_refs[layer + 1][...], (batch, four_h))
            gin_rows = [r + bias_next for r in next_rows]

    # TODO(synk): inter-layer LSTM dropout (p=drop_prob) and nn.Dropout(0.3)
    # are identity in eval mode; training-mode dropout is not modeled.
    # fc + sigmoid on the LAST timestep only — everything else is discarded by
    # `sig_out.view(batch, -1)[:, -1]` in the reference module.
    logits = jnp.dot(h, fc_w_ref[...],
                     preferred_element_type=jnp.float32) + fc_b_ref[...]
    sig_ref[...] = jax.nn.sigmoid(logits)


# ---------------------------------------------------------------------------
# Full forward pass (mirrors Senti_LSTM.forward, eval mode)
# ---------------------------------------------------------------------------
def senti_lstm_forward(params, x_ids, hidden):
    """x_ids: (B, T) int32 token ids; hidden: (h0, c0), each (L, B, H)."""
    batch_size, seq_len = x_ids.shape
    hidden_dim, out_dim = params["fc_w"].shape
    h0_all, c0_all = hidden
    n_layers = h0_all.shape[0]
    four_h = 4 * hidden_dim

    # Pad batch to the 8-row sublane granularity: per-step cost is identical
    # for B <= 8, padded rows are free and sliced off afterwards.
    b_pad = ((batch_size + 7) // 8) * 8
    pad = b_pad - batch_size
    x_pad = jnp.pad(x_ids, ((0, pad), (0, 0)))
    h0_pad = jnp.pad(h0_all, ((0, 0), (0, pad), (0, 0)))
    c0_pad = jnp.pad(c0_all, ((0, 0), (0, pad), (0, 0)))

    # Pre-scale the g-gate columns by 2 so the kernel can use a single
    # full-width sigmoid per step (tanh(g) = 2*sigmoid(2g) - 1).
    def scale_g(a):
        return jnp.concatenate(
            [a[..., :2 * hidden_dim],
             a[..., 2 * hidden_dim:3 * hidden_dim] * 2.0,
             a[..., 3 * hidden_dim:]], axis=-1)

    # Fold layer-0's input projection AND bias into the embedding table: one
    # small (V, E) @ (E, 4H) matmul + row gather (gather/transpose glue stays
    # in plain JAX).
    w_ih0 = scale_g(params["lstm"][0]["w_ih"])
    b0 = scale_g(params["lstm"][0]["b"])
    proj_table = jnp.dot(params["embedding"], w_ih0,
                         preferred_element_type=jnp.float32) + b0      # (V, 4H)
    xp0 = jnp.take(proj_table, x_pad, axis=0)                          # (B_pad, T, 4H)
    xp0 = jnp.transpose(xp0, (1, 0, 2)).reshape(seq_len * b_pad, four_h)

    # Per-layer step weights in bf16; inner layers get the column-fused
    # [W_hh[l] | W_ih[l+1]] weight so one MXU pass per step also produces the
    # next layer's input projection (fills the 256-wide MXU on v6e/v7x).
    inputs = [xp0]
    for layer in range(n_layers):
        w_hh = scale_g(params["lstm"][layer]["w_hh"])
        if layer + 1 < n_layers:
            w_ih_next = scale_g(params["lstm"][layer + 1]["w_ih"])
            w_step = jnp.concatenate([w_hh, w_ih_next], axis=1)        # (H, 8H)
        else:
            w_step = w_hh                                              # (H, 4H)
        inputs.append(w_step.astype(jnp.bfloat16))
    for layer in range(1, n_layers):
        inputs.append(scale_g(params["lstm"][layer]["b"]))             # (1, 4H)
    inputs += [params["fc_w"], params["fc_b"], h0_pad, c0_pad]

    kernel = functools.partial(
        _fused_senti_lstm_kernel, n_layers, seq_len, b_pad, hidden_dim)

    out_shapes = (
        jax.ShapeDtypeStruct((b_pad, out_dim), jnp.float32),              # sigmoid(fc(h_T))
        jax.ShapeDtypeStruct((n_layers, b_pad, hidden_dim), jnp.float32), # h_n
        jax.ShapeDtypeStruct((n_layers, b_pad, hidden_dim), jnp.float32), # c_n
    )

    # Single invocation, everything VMEM/vreg resident: no grid, no scratch,
    # no pipelining needed (per review).
    # TODO(synk): for large deployed batches, add a leading batch grid axis
    # marked "parallel" (uses the second TensorCore on v7x); pointless at B=2.
    sig_full, h_n, c_n = pl.pallas_call(kernel, out_shape=out_shapes)(*inputs)

    # Matches `sigmoid(fc(...)).view(batch, -1)[:, -1]` of the reference.
    sig_out = sig_full[:batch_size, -1]
    return sig_out, (h_n[:, :batch_size], c_n[:, :batch_size])


# ---------------------------------------------------------------------------
# Pure-JAX f32 reference (eval mode) for correctness checking
# ---------------------------------------------------------------------------
def senti_lstm_reference(params, x_ids, hidden):
    h0_all, c0_all = hidden
    n_layers = h0_all.shape[0]
    hidden_dim, _ = params["fc_w"].shape
    layer_in = params["embedding"][x_ids]                 # (B, T, E)
    h_n, c_n = [], []
    for l in range(n_layers):
        w_ih = params["lstm"][l]["w_ih"]
        w_hh = params["lstm"][l]["w_hh"]
        b = params["lstm"][l]["b"][0]
        h, c = h0_all[l], c0_all[l]
        outs = []
        for t in range(x_ids.shape[1]):
            gates = layer_in[:, t] @ w_ih + h @ w_hh + b
            i = jax.nn.sigmoid(gates[:, :hidden_dim])
            f = jax.nn.sigmoid(gates[:, hidden_dim:2 * hidden_dim])
            g = jnp.tanh(gates[:, 2 * hidden_dim:3 * hidden_dim])
            o = jax.nn.sigmoid(gates[:, 3 * hidden_dim:])
            c = f * c + i * g
            h = o * jnp.tanh(c)
            outs.append(h)
        layer_in = jnp.stack(outs, axis=1)
        h_n.append(h)
        c_n.append(c)
    sig = jax.nn.sigmoid(layer_in[:, -1] @ params["fc_w"] + params["fc_b"])
    return sig[:, -1], (jnp.stack(h_n), jnp.stack(c_n))


# ---------------------------------------------------------------------------
# Deterministic parameter construction
# ---------------------------------------------------------------------------
def make_params(key, vocab_size, output_size, embedding_dim, hidden_dim, n_layers):
    keys = jax.random.split(key, 3 + 5 * n_layers)
    scale = 1.0 / jnp.sqrt(hidden_dim)

    params = {
        "embedding": jax.random.normal(
            keys[0], (vocab_size, embedding_dim), jnp.float32),
        # nn.Linear(hidden_dim, output_size): weight (O, H) -> stored transposed (H, O)
        "fc_w": jax.random.uniform(
            keys[1], (hidden_dim, output_size), jnp.float32, -scale, scale),
        "fc_b": jax.random.uniform(
            keys[2], (1, output_size), jnp.float32, -scale, scale),
        "lstm": [],
    }
    for layer in range(n_layers):
        in_dim = embedding_dim if layer == 0 else hidden_dim
        k = keys[3 + 5 * layer: 3 + 5 * (layer + 1)]
        # PyTorch stores W_ih (4H, in), W_hh (4H, H); we pre-transpose for x @ W.
        w_ih = jax.random.uniform(k[0], (in_dim, 4 * hidden_dim), jnp.float32, -scale, scale)
        w_hh = jax.random.uniform(k[1], (hidden_dim, 4 * hidden_dim), jnp.float32, -scale, scale)
        b_ih = jax.random.uniform(k[2], (4 * hidden_dim,), jnp.float32, -scale, scale)
        b_hh = jax.random.uniform(k[3], (4 * hidden_dim,), jnp.float32, -scale, scale)
        params["lstm"].append({
            "w_ih": w_ih,
            "w_hh": w_hh,
            "b": (b_ih + b_hh).reshape(1, 4 * hidden_dim),
        })
    return params


# ---------------------------------------------------------------------------
if __name__ == "__main__":
    vocab_size = 50
    output_size = 1
    embedding_dim = 32
    hidden_dim = 32
    n_layers = 2
    batch = 2
    seq_len = 8

    root = jax.random.PRNGKey(0)
    k_params, k_ids = jax.random.split(root)

    params = make_params(k_params, vocab_size, output_size,
                         embedding_dim, hidden_dim, n_layers)

    x_ids = jax.random.randint(k_ids, (batch, seq_len), 0, vocab_size, jnp.int32)
    hidden0 = (
        jnp.zeros((n_layers, batch, hidden_dim), jnp.float32),
        jnp.zeros((n_layers, batch, hidden_dim), jnp.float32),
    )

    fwd = jax.jit(senti_lstm_forward)
    sig_out, (h_n, c_n) = fwd(params, x_ids, hidden0)
    sig_out = jax.block_until_ready(sig_out)
    h_n = jax.block_until_ready(h_n)
    c_n = jax.block_until_ready(c_n)

    assert sig_out.shape == (batch,)
    assert h_n.shape == (n_layers, batch, hidden_dim)
    assert c_n.shape == (n_layers, batch, hidden_dim)
    assert bool(jnp.all(jnp.isfinite(sig_out)))
    assert bool(jnp.all((sig_out >= 0.0) & (sig_out <= 1.0)))
    assert bool(jnp.all(jnp.isfinite(h_n))) and bool(jnp.all(jnp.isfinite(c_n)))

    # Correctness vs pure-JAX f32 reference (kernel uses bf16 MXU operands, so
    # a loose tolerance).
    ref_sig, (ref_h, ref_c) = senti_lstm_reference(params, x_ids, hidden0)
    tol = 5e-2
    assert float(jnp.max(jnp.abs(sig_out - ref_sig))) < tol
    assert float(jnp.max(jnp.abs(h_n - ref_h))) < tol
    assert float(jnp.max(jnp.abs(c_n - ref_c))) < tol

    print("KERNEL_OK")
</pallas_src>

<mosaic_0001>
module attributes {stable_mosaic.version = 11 : i64} {
  func.func @_fused_senti_lstm_kernel(%arg0: memref<64x128xf32, #tpu.memory_space<vmem>>, %arg1: memref<32x256xbf16, #tpu.memory_space<vmem>>, %arg2: memref<32x128xbf16, #tpu.memory_space<vmem>>, %arg3: memref<1x128xf32, #tpu.memory_space<vmem>>, %arg4: memref<32x1xf32, #tpu.memory_space<vmem>>, %arg5: memref<1x1xf32, #tpu.memory_space<vmem>>, %arg6: memref<2x8x32xf32, #tpu.memory_space<vmem>>, %arg7: memref<2x8x32xf32, #tpu.memory_space<vmem>>, %arg8: memref<8x1xf32, #tpu.memory_space<vmem>>, %arg9: memref<2x8x32xf32, #tpu.memory_space<vmem>>, %arg10: memref<2x8x32xf32, #tpu.memory_space<vmem>>) attributes {dimension_semantics = [], scalar_prefetch = 0 : i64, scratch_operands = 0 : i64, tpu.core_type = #tpu.core_type<tc>} {
    %c0 = arith.constant 0 : index
    %c0_0 = arith.constant 0 : index
    %0 = vector.load %arg1[%c0, %c0_0] : memref<32x256xbf16, #tpu.memory_space<vmem>>, vector<32x256xbf16>
    %c0_1 = arith.constant 0 : index
    %c0_2 = arith.constant 0 : index
    %c0_3 = arith.constant 0 : index
    %1 = vector.load %arg6[%c0_1, %c0_2, %c0_3] : memref<2x8x32xf32, #tpu.memory_space<vmem>>, vector<1x8x32xf32>
    %2 = vector.shape_cast %1 : vector<1x8x32xf32> to vector<8x32xf32>
    %c0_4 = arith.constant 0 : index
    %c0_5 = arith.constant 0 : index
    %c0_6 = arith.constant 0 : index
    %3 = vector.load %arg7[%c0_4, %c0_5, %c0_6] : memref<2x8x32xf32, #tpu.memory_space<vmem>>, vector<1x8x32xf32>
    %4 = vector.shape_cast %3 : vector<1x8x32xf32> to vector<8x32xf32>
    %c0_7 = arith.constant 0 : index
    %c0_8 = arith.constant 0 : index
    %5 = vector.load %arg0[%c0_7, %c0_8] : memref<64x128xf32, #tpu.memory_space<vmem>>, vector<8x128xf32>
    %6 = arith.truncf %2 : vector<8x32xf32> to vector<8x32xbf16>
    %cst = arith.constant dense<0.000000e+00> : vector<8x256xf32>
    %7 = tpu.matmul %6, %0, %cst {dimension_numbers = #tpu.dot_dimension_numbers<[1], [0], [0], [1], [0, 0, 1, 1], [], []>} : vector<8x32xbf16>, vector<32x256xbf16>, vector<8x256xf32> -> vector<8x256xf32>
    %8 = vector.extract_strided_slice %7 {offsets = [0, 0], sizes = [8, 128], strides = [1, 1]} : vector<8x256xf32> to vector<8x128xf32>
    %9 = arith.addf %5, %8 : vector<8x128xf32>
    %10 = arith.negf %9 : vector<8x128xf32>
    %11 = math.exp %10 : vector<8x128xf32>
    %cst_9 = arith.constant 1.000000e+00 : f32
    %12 = vector.broadcast %cst_9 : f32 to vector<8x128xf32>
    %13 = arith.addf %12, %11 : vector<8x128xf32>
    %14 = arith.divf %12, %13 : vector<8x128xf32>
    %15 = vector.extract_strided_slice %14 {offsets = [0, 0], sizes = [8, 32], strides = [1, 1]} : vector<8x128xf32> to vector<8x32xf32>
    %16 = vector.extract_strided_slice %14 {offsets = [0, 32], sizes = [8, 32], strides = [1, 1]} : vector<8x128xf32> to vector<8x32xf32>
    %17 = vector.extract_strided_slice %14 {offsets = [0, 64], sizes = [8, 32], strides = [1, 1]} : vector<8x128xf32> to vector<8x32xf32>
    %cst_10 = arith.constant 2.000000e+00 : f32
    %18 = vector.broadcast %cst_10 : f32 to vector<8x32xf32>
    %19 = arith.mulf %18, %17 : vector<8x32xf32>
    %cst_11 = arith.constant 1.000000e+00 : f32
    %20 = vector.broadcast %cst_11 : f32 to vector<8x32xf32>
    %21 = arith.subf %19, %20 : vector<8x32xf32>
    %22 = vector.extract_strided_slice %14 {offsets = [0, 96], sizes = [8, 32], strides = [1, 1]} : vector<8x128xf32> to vector<8x32xf32>
    %23 = arith.mulf %16, %4 : vector<8x32xf32>
    %24 = arith.mulf %15, %21 : vector<8x32xf32>
    %25 = arith.addf %23, %24 : vector<8x32xf32>
    %26 = math.tanh %25 : vector<8x32xf32>
    %27 = arith.mulf %22, %26 : vector<8x32xf32>
    %c8 = arith.constant 8 : index
    %c0_12 = arith.constant 0 : index
    %28 = vector.load %arg0[%c8, %c0_12] : memref<64x128xf32, #tpu.memory_space<vmem>>, vector<8x128xf32>
    %29 = arith.truncf %27 : vector<8x32xf32> to vector<8x32xbf16>
    %cst_13 = arith.constant dense<0.000000e+00> : vector<8x256xf32>
    %30 = tpu.matmul %29, %0, %cst_13 {dimension_numbers = #tpu.dot_dimension_numbers<[1], [0], [0], [1], [0, 0, 1, 1], [], []>} : vector<8x32xbf16>, vector<32x256xbf16>, vector<8x256xf32> -> vector<8x256xf32>
    %31 = vector.extract_strided_slice %30 {offsets = [0, 0], sizes = [8, 128], strides = [1, 1]} : vector<8x256xf32> to vector<8x128xf32>
    %32 = arith.addf %28, %31 : vector<8x128xf32>
    %33 = arith.negf %32 : vector<8x128xf32>
    %34 = math.exp %33 : vector<8x128xf32>
    %cst_14 = arith.constant 1.000000e+00 : f32
    %35 = vector.broadcast %cst_14 : f32 to vector<8x128xf32>
    %36 = arith.addf %35, %34 : vector<8x128xf32>
    %37 = arith.divf %35, %36 : vector<8x128xf32>
    %38 = vector.extract_strided_slice %37 {offsets = [0, 0], sizes = [8, 32], strides = [1, 1]} : vector<8x128xf32> to vector<8x32xf32>
    %39 = vector.extract_strided_slice %37 {offsets = [0, 32], sizes = [8, 32], strides = [1, 1]} : vector<8x128xf32> to vector<8x32xf32>
    %40 = vector.extract_strided_slice %37 {offsets = [0, 64], sizes = [8, 32], strides = [1, 1]} : vector<8x128xf32> to vector<8x32xf32>
    %cst_15 = arith.constant 2.000000e+00 : f32
    %41 = vector.broadcast %cst_15 : f32 to vector<8x32xf32>
    %42 = arith.mulf %41, %40 : vector<8x32xf32>
    %cst_16 = arith.constant 1.000000e+00 : f32
    %43 = vector.broadcast %cst_16 : f32 to vector<8x32xf32>
    %44 = arith.subf %42, %43 : vector<8x32xf32>
    %45 = vector.extract_strided_slice %37 {offsets = [0, 96], sizes = [8, 32], strides = [1, 1]} : vector<8x128xf32> to vector<8x32xf32>
    %46 = arith.mulf %39, %25 : vector<8x32xf32>
    %47 = arith.mulf %38, %44 : vector<8x32xf32>
    %48 = arith.addf %46, %47 : vector<8x32xf32>
    %49 = math.tanh %48 : vector<8x32xf32>
    %50 = arith.mulf %45, %49 : vector<8x32xf32>
    %51 = vector.extract_strided_slice %30 {offsets = [0, 128], sizes = [8, 128], strides = [1, 1]} : vector<8x256xf32> to vector<8x128xf32>
    %c16 = arith.constant 16 : index
    %c0_17 = arith.constant 0 : index
    %52 = vector.load %arg0[%c16, %c0_17] : memref<64x128xf32, #tpu.memory_space<vmem>>, vector<8x128xf32>
    %53 = arith.truncf %50 : vector<8x32xf32> to vector<8x32xbf16>
    %cst_18 = arith.constant dense<0.000000e+00> : vector<8x256xf32>
    %54 = tpu.matmul %53, %0, %cst_18 {dimension_numbers = #tpu.dot_dimension_numbers<[1], [0], [0], [1], [0, 0, 1, 1], [], []>} : vector<8x32xbf16>, vector<32x256xbf16>, vector<8x256xf32> -> vector<8x256xf32>
    %55 = vector.extract_strided_slice %54 {offsets = [0, 0], sizes = [8, 128], strides = [1, 1]} : vector<8x256xf32> to vector<8x128xf32>
    %56 = arith.addf %52, %55 : vector<8x128xf32>
    %57 = arith.negf %56 : vector<8x128xf32>
    %58 = math.exp %57 : vector<8x128xf32>
    %cst_19 = arith.constant 1.000000e+00 : f32
    %59 = vector.broadcast %cst_19 : f32 to vector<8x128xf32>
    %60 = arith.addf %59, %58 : vector<8x128xf32>
    %61 = arith.divf %59, %60 : vector<8x128xf32>
    %62 = vector.extract_strided_slice %61 {offsets = [0, 0], sizes = [8, 32], strides = [1, 1]} : vector<8x128xf32> to vector<8x32xf32>
    %63 = vector.extract_strided_slice %61 {offsets = [0, 32], sizes = [8, 32], strides = [1, 1]} : vector<8x128xf32> to vector<8x32xf32>
    %64 = vector.extract_strided_slice %61 {offsets = [0, 64], sizes = [8, 32], strides = [1, 1]} : vector<8x128xf32> to vector<8x32xf32>
    %cst_20 = arith.constant 2.000000e+00 : f32
    %65 = vector.broadcast %cst_20 : f32 to vector<8x32xf32>
    %66 = arith.mulf %65, %64 : vector<8x32xf32>
    %cst_21 = arith.constant 1.000000e+00 : f32
    %67 = vector.broadcast %cst_21 : f32 to vector<8x32xf32>
    %68 = arith.subf %66, %67 : vector<8x32xf32>
    %69 = vector.extract_strided_slice %61 {offsets = [0, 96], sizes = [8, 32], strides = [1, 1]} : vector<8x128xf32> to vector<8x32xf32>
    %70 = arith.mulf %63, %48 : vector<8x32xf32>
    %71 = arith.mulf %62, %68 : vector<8x32xf32>
    %72 = arith.addf %70, %71 : vector<8x32xf32>
    %73 = math.tanh %72 : vector<8x32xf32>
    %74 = arith.mulf %69, %73 : vector<8x32xf32>
    %75 = vector.extract_strided_slice %54 {offsets = [0, 128], sizes = [8, 128], strides = [1, 1]} : vector<8x256xf32> to vector<8x128xf32>
    %c24 = arith.constant 24 : index
    %c0_22 = arith.constant 0 : index
    %76 = vector.load %arg0[%c24, %c0_22] : memref<64x128xf32, #tpu.memory_space<vmem>>, vector<8x128xf32>
    %77 = arith.truncf %74 : vector<8x32xf32> to vector<8x32xbf16>
    %cst_23 = arith.constant dense<0.000000e+00> : vector<8x256xf32>
    %78 = tpu.matmul %77, %0, %cst_23 {dimension_numbers = #tpu.dot_dimension_numbers<[1], [0], [0], [1], [0, 0, 1, 1], [], []>} : vector<8x32xbf16>, vector<32x256xbf16>, vector<8x256xf32> -> vector<8x256xf32>
    %79 = vector.extract_strided_slice %78 {offsets = [0, 0], sizes = [8, 128], strides = [1, 1]} : vector<8x256xf32> to vector<8x128xf32>
    %80 = arith.addf %76, %79 : vector<8x128xf32>
    %81 = arith.negf %80 : vector<8x128xf32>
    %82 = math.exp %81 : vector<8x128xf32>
    %cst_24 = arith.constant 1.000000e+00 : f32
    %83 = vector.broadcast %cst_24 : f32 to vector<8x128xf32>
    %84 = arith.addf %83, %82 : vector<8x128xf32>
    %85 = arith.divf %83, %84 : vector<8x128xf32>
    %86 = vector.extract_strided_slice %85 {offsets = [0, 0], sizes = [8, 32], strides = [1, 1]} : vector<8x128xf32> to vector<8x32xf32>
    %87 = vector.extract_strided_slice %85 {offsets = [0, 32], sizes = [8, 32], strides = [1, 1]} : vector<8x128xf32> to vector<8x32xf32>
    %88 = vector.extract_strided_slice %85 {offsets = [0, 64], sizes = [8, 32], strides = [1, 1]} : vector<8x128xf32> to vector<8x32xf32>
    %cst_25 = arith.constant 2.000000e+00 : f32
    %89 = vector.broadcast %cst_25 : f32 to vector<8x32xf32>
    %90 = arith.mulf %89, %88 : vector<8x32xf32>
    %cst_26 = arith.constant 1.000000e+00 : f32
    %91 = vector.broadcast %cst_26 : f32 to vector<8x32xf32>
    %92 = arith.subf %90, %91 : vector<8x32xf32>
    %93 = vector.extract_strided_slice %85 {offsets = [0, 96], sizes = [8, 32], strides = [1, 1]} : vector<8x128xf32> to vector<8x32xf32>
    %94 = arith.mulf %87, %72 : vector<8x32xf32>
    %95 = arith.mulf %86, %92 : vector<8x32xf32>
    %96 = arith.addf %94, %95 : vector<8x32xf32>
    %97 = math.tanh %96 : vector<8x32xf32>
    %98 = arith.mulf %93, %97 : vector<8x32xf32>
    %99 = vector.extract_strided_slice %78 {offsets = [0, 128], sizes = [8, 128], strides = [1, 1]} : vector<8x256xf32> to vector<8x128xf32>
    %c32 = arith.constant 32 : index
    %c0_27 = arith.constant 0 : index
    %100 = vector.load %arg0[%c32, %c0_27] : memref<64x128xf32, #tpu.memory_space<vmem>>, vector<8x128xf32>
    %101 = arith.truncf %98 : vector<8x32xf32> to vector<8x32xbf16>
    %cst_28 = arith.constant dense<0.000000e+00> : vector<8x256xf32>
    %102 = tpu.matmul %101, %0, %cst_28 {dimension_numbers = #tpu.dot_dimension_numbers<[1], [0], [0], [1], [0, 0, 1, 1], [], []>} : vector<8x32xbf16>, vector<32x256xbf16>, vector<8x256xf32> -> vector<8x256xf32>
    %103 = vector.extract_strided_slice %102 {offsets = [0, 0], sizes = [8, 128], strides = [1, 1]} : vector<8x256xf32> to vector<8x128xf32>
    %104 = arith.addf %100, %103 : vector<8x128xf32>
    %105 = arith.negf %104 : vector<8x128xf32>
    %106 = math.exp %105 : vector<8x128xf32>
    %cst_29 = arith.constant 1.000000e+00 : f32
    %107 = vector.broadcast %cst_29 : f32 to vector<8x128xf32>
    %108 = arith.addf %107, %106 : vector<8x128xf32>
    %109 = arith.divf %107, %108 : vector<8x128xf32>
    %110 = vector.extract_strided_slice %109 {offsets = [0, 0], sizes = [8, 32], strides = [1, 1]} : vector<8x128xf32> to vector<8x32xf32>
    %111 = vector.extract_strided_slice %109 {offsets = [0, 32], sizes = [8, 32], strides = [1, 1]} : vector<8x128xf32> to vector<8x32xf32>
    %112 = vector.extract_strided_slice %109 {offsets = [0, 64], sizes = [8, 32], strides = [1, 1]} : vector<8x128xf32> to vector<8x32xf32>
    %cst_30 = arith.constant 2.000000e+00 : f32
    %113 = vector.broadcast %cst_30 : f32 to vector<8x32xf32>
    %114 = arith.mulf %113, %112 : vector<8x32xf32>
    %cst_31 = arith.constant 1.000000e+00 : f32
    %115 = vector.broadcast %cst_31 : f32 to vector<8x32xf32>
    %116 = arith.subf %114, %115 : vector<8x32xf32>
    %117 = vector.extract_strided_slice %109 {offsets = [0, 96], sizes = [8, 32], strides = [1, 1]} : vector<8x128xf32> to vector<8x32xf32>
    %118 = arith.mulf %111, %96 : vector<8x32xf32>
    %119 = arith.mulf %110, %116 : vector<8x32xf32>
    %120 = arith.addf %118, %119 : vector<8x32xf32>
    %121 = math.tanh %120 : vector<8x32xf32>
    %122 = arith.mulf %117, %121 : vector<8x32xf32>
    %123 = vector.extract_strided_slice %102 {offsets = [0, 128], sizes = [8, 128], strides = [1, 1]} : vector<8x256xf32> to vector<8x128xf32>
    %c40 = arith.constant 40 : index
    %c0_32 = arith.constant 0 : index
    %124 = vector.load %arg0[%c40, %c0_32] : memref<64x128xf32, #tpu.memory_space<vmem>>, vector<8x128xf32>
    %125 = arith.truncf %122 : vector<8x32xf32> to vector<8x32xbf16>
    %cst_33 = arith.constant dense<0.000000e+00> : vector<8x256xf32>
    %126 = tpu.matmul %125, %0, %cst_33 {dimension_numbers = #tpu.dot_dimension_numbers<[1], [0], [0], [1], [0, 0, 1, 1], [], []>} : vector<8x32xbf16>, vector<32x256xbf16>, vector<8x256xf32> -> vector<8x256xf32>
    %127 = vector.extract_strided_slice %126 {offsets = [0, 0], sizes = [8, 128], strides = [1, 1]} : vector<8x256xf32> to vector<8x128xf32>
    %128 = arith.addf %124, %127 : vector<8x128xf32>
    %129 = arith.negf %128 : vector<8x128xf32>
    %130 = math.exp %129 : vector<8x128xf32>
    %cst_34 = arith.constant 1.000000e+00 : f32
    %131 = vector.broadcast %cst_34 : f32 to vector<8x128xf32>
    %132 = arith.addf %131, %130 : vector<8x128xf32>
    %133 = arith.divf %131, %132 : vector<8x128xf32>
    %134 = vector.extract_strided_slice %133 {offsets = [0, 0], sizes = [8, 32], strides = [1, 1]} : vector<8x128xf32> to vector<8x32xf32>
    %135 = vector.extract_strided_slice %133 {offsets = [0, 32], sizes = [8, 32], strides = [1, 1]} : vector<8x128xf32> to vector<8x32xf32>
    %136 = vector.extract_strided_slice %133 {offsets = [0, 64], sizes = [8, 32], strides = [1, 1]} : vector<8x128xf32> to vector<8x32xf32>
    %cst_35 = arith.constant 2.000000e+00 : f32
    %137 = vector.broadcast %cst_35 : f32 to vector<8x32xf32>
    %138 = arith.mulf %137, %136 : vector<8x32xf32>
    %cst_36 = arith.constant 1.000000e+00 : f32
    %139 = vector.broadcast %cst_36 : f32 to vector<8x32xf32>
    %140 = arith.subf %138, %139 : vector<8x32xf32>
    %141 = vector.extract_strided_slice %133 {offsets = [0, 96], sizes = [8, 32], strides = [1, 1]} : vector<8x128xf32> to vector<8x32xf32>
    %142 = arith.mulf %135, %120 : vector<8x32xf32>
    %143 = arith.mulf %134, %140 : vector<8x32xf32>
    %144 = arith.addf %142, %143 : vector<8x32xf32>
    %145 = math.tanh %144 : vector<8x32xf32>
    %146 = arith.mulf %141, %145 : vector<8x32xf32>
    %147 = vector.extract_strided_slice %126 {offsets = [0, 128], sizes = [8, 128], strides = [1, 1]} : vector<8x256xf32> to vector<8x128xf32>
    %c48 = arith.constant 48 : index
    %c0_37 = arith.constant 0 : index
    %148 = vector.load %arg0[%c48, %c0_37] : memref<64x128xf32, #tpu.memory_space<vmem>>, vector<8x128xf32>
    %149 = arith.truncf %146 : vector<8x32xf32> to vector<8x32xbf16>
    %cst_38 = arith.constant dense<0.000000e+00> : vector<8x256xf32>
    %150 = tpu.matmul %149, %0, %cst_38 {dimension_numbers = #tpu.dot_dimension_numbers<[1], [0], [0], [1], [0, 0, 1, 1], [], []>} : vector<8x32xbf16>, vector<32x256xbf16>, vector<8x256xf32> -> vector<8x256xf32>
    %151 = vector.extract_strided_slice %150 {offsets = [0, 0], sizes = [8, 128], strides = [1, 1]} : vector<8x256xf32> to vector<8x128xf32>
    %152 = arith.addf %148, %151 : vector<8x128xf32>
    %153 = arith.negf %152 : vector<8x128xf32>
    %154 = math.exp %153 : vector<8x128xf32>
    %cst_39 = arith.constant 1.000000e+00 : f32
    %155 = vector.broadcast %cst_39 : f32 to vector<8x128xf32>
    %156 = arith.addf %155, %154 : vector<8x128xf32>
    %157 = arith.divf %155, %156 : vector<8x128xf32>
    %158 = vector.extract_strided_slice %157 {offsets = [0, 0], sizes = [8, 32], strides = [1, 1]} : vector<8x128xf32> to vector<8x32xf32>
    %159 = vector.extract_strided_slice %157 {offsets = [0, 32], sizes = [8, 32], strides = [1, 1]} : vector<8x128xf32> to vector<8x32xf32>
    %160 = vector.extract_strided_slice %157 {offsets = [0, 64], sizes = [8, 32], strides = [1, 1]} : vector<8x128xf32> to vector<8x32xf32>
    %cst_40 = arith.constant 2.000000e+00 : f32
    %161 = vector.broadcast %cst_40 : f32 to vector<8x32xf32>
    %162 = arith.mulf %161, %160 : vector<8x32xf32>
    %cst_41 = arith.constant 1.000000e+00 : f32
    %163 = vector.broadcast %cst_41 : f32 to vector<8x32xf32>
    %164 = arith.subf %162, %163 : vector<8x32xf32>
    %165 = vector.extract_strided_slice %157 {offsets = [0, 96], sizes = [8, 32], strides = [1, 1]} : vector<8x128xf32> to vector<8x32xf32>
    %166 = arith.mulf %159, %144 : vector<8x32xf32>
    %167 = arith.mulf %158, %164 : vector<8x32xf32>
    %168 = arith.addf %166, %167 : vector<8x32xf32>
    %169 = math.tanh %168 : vector<8x32xf32>
    %170 = arith.mulf %165, %169 : vector<8x32xf32>
    %171 = vector.extract_strided_slice %150 {offsets = [0, 128], sizes = [8, 128], strides = [1, 1]} : vector<8x256xf32> to vector<8x128xf32>
    %c56 = arith.constant 56 : index
    %c0_42 = arith.constant 0 : index
    %172 = vector.load %arg0[%c56, %c0_42] : memref<64x128xf32, #tpu.memory_space<vmem>>, vector<8x128xf32>
    %173 = arith.truncf %170 : vector<8x32xf32> to vector<8x32xbf16>
    %cst_43 = arith.constant dense<0.000000e+00> : vector<8x256xf32>
    %174 = tpu.matmul %173, %0, %cst_43 {dimension_numbers = #tpu.dot_dimension_numbers<[1], [0], [0], [1], [0, 0, 1, 1], [], []>} : vector<8x32xbf16>, vector<32x256xbf16>, vector<8x256xf32> -> vector<8x256xf32>
    %175 = vector.extract_strided_slice %174 {offsets = [0, 0], sizes = [8, 128], strides = [1, 1]} : vector<8x256xf32> to vector<8x128xf32>
    %176 = arith.addf %172, %175 : vector<8x128xf32>
    %177 = arith.negf %176 : vector<8x128xf32>
    %178 = math.exp %177 : vector<8x128xf32>
    %cst_44 = arith.constant 1.000000e+00 : f32
    %179 = vector.broadcast %cst_44 : f32 to vector<8x128xf32>
    %180 = arith.addf %179, %178 : vector<8x128xf32>
    %181 = arith.divf %179, %180 : vector<8x128xf32>
    %182 = vector.extract_strided_slice %181 {offsets = [0, 0], sizes = [8, 32], strides = [1, 1]} : vector<8x128xf32> to vector<8x32xf32>
    %183 = vector.extract_strided_slice %181 {offsets = [0, 32], sizes = [8, 32], strides = [1, 1]} : vector<8x128xf32> to vector<8x32xf32>
    %184 = vector.extract_strided_slice %181 {offsets = [0, 64], sizes = [8, 32], strides = [1, 1]} : vector<8x128xf32> to vector<8x32xf32>
    %cst_45 = arith.constant 2.000000e+00 : f32
    %185 = vector.broadcast %cst_45 : f32 to vector<8x32xf32>
    %186 = arith.mulf %185, %184 : vector<8x32xf32>
    %cst_46 = arith.constant 1.000000e+00 : f32
    %187 = vector.broadcast %cst_46 : f32 to vector<8x32xf32>
    %188 = arith.subf %186, %187 : vector<8x32xf32>
    %189 = vector.extract_strided_slice %181 {offsets = [0, 96], sizes = [8, 32], strides = [1, 1]} : vector<8x128xf32> to vector<8x32xf32>
    %190 = arith.mulf %183, %168 : vector<8x32xf32>
    %191 = arith.mulf %182, %188 : vector<8x32xf32>
    %192 = arith.addf %190, %191 : vector<8x32xf32>
    %193 = math.tanh %192 : vector<8x32xf32>
    %194 = arith.mulf %189, %193 : vector<8x32xf32>
    %195 = vector.extract_strided_slice %174 {offsets = [0, 128], sizes = [8, 128], strides = [1, 1]} : vector<8x256xf32> to vector<8x128xf32>
    %c0_47 = arith.constant 0 : index
    %c0_48 = arith.constant 0 : index
    %c0_49 = arith.constant 0 : index
    %196 = vector.load %arg9[%c0_47, %c0_48, %c0_49] : memref<2x8x32xf32, #tpu.memory_space<vmem>>, vector<1x8x32xf32>
    %197 = vector.shape_cast %196 : vector<1x8x32xf32> to vector<8x32xf32>
    %198 = vector.shape_cast %194 : vector<8x32xf32> to vector<1x8x32xf32>
    tpu.vector_store %arg9[%c0_47, %c0_48, %c0_49], %198 {strides = array<i32>} : memref<2x8x32xf32, #tpu.memory_space<vmem>>, vector<1x8x32xf32>,
    %c0_50 = arith.constant 0 : index
    %c0_51 = arith.constant 0 : index
    %c0_52 = arith.constant 0 : index
    %199 = vector.load %arg10[%c0_50, %c0_51, %c0_52] : memref<2x8x32xf32, #tpu.memory_space<vmem>>, vector<1x8x32xf32>
    %200 = vector.shape_cast %199 : vector<1x8x32xf32> to vector<8x32xf32>
    %201 = vector.shape_cast %192 : vector<8x32xf32> to vector<1x8x32xf32>
    tpu.vector_store %arg10[%c0_50, %c0_51, %c0_52], %201 {strides = array<i32>} : memref<2x8x32xf32, #tpu.memory_space<vmem>>, vector<1x8x32xf32>,
    %202 = arith.truncf %194 : vector<8x32xf32> to vector<8x32xbf16>
    %cst_53 = arith.constant dense<0.000000e+00> : vector<8x256xf32>
    %203 = tpu.matmul %202, %0, %cst_53 {dimension_numbers = #tpu.dot_dimension_numbers<[1], [0], [0], [1], [0, 0, 1, 1], [], []>} : vector<8x32xbf16>, vector<32x256xbf16>, vector<8x256xf32> -> vector<8x256xf32>
    %204 = vector.extract_strided_slice %203 {offsets = [0, 128], sizes = [8, 128], strides = [1, 1]} : vector<8x256xf32> to vector<8x128xf32>
    %c0_54 = arith.constant 0 : index
    %c0_55 = arith.constant 0 : index
    %205 = vector.load %arg3[%c0_54, %c0_55] : memref<1x128xf32, #tpu.memory_space<vmem>>, vector<1x128xf32>
    %206 = vector.shape_cast %205 : vector<1x128xf32> to vector<1x128xf32>
    %207 = vector.broadcast %206 : vector<1x128xf32> to vector<8x128xf32>
    %208 = arith.addf %51, %207 : vector<8x128xf32>
    %209 = arith.addf %75, %207 : vector<8x128xf32>
    %210 = arith.addf %99, %207 : vector<8x128xf32>
    %211 = arith.addf %123, %207 : vector<8x128xf32>
    %212 = arith.addf %147, %207 : vector<8x128xf32>
    %213 = arith.addf %171, %207 : vector<8x128xf32>
    %214 = arith.addf %195, %207 : vector<8x128xf32>
    %215 = arith.addf %204, %207 : vector<8x128xf32>
    %c0_56 = arith.constant 0 : index
    %c0_57 = arith.constant 0 : index
    %216 = vector.load %arg2[%c0_56, %c0_57] : memref<32x128xbf16, #tpu.memory_space<vmem>>, vector<32x128xbf16>
    %c1 = arith.constant 1 : index
    %c0_58 = arith.constant 0 : index
    %c0_59 = arith.constant 0 : index
    %217 = vector.load %arg6[%c1, %c0_58, %c0_59] : memref<2x8x32xf32, #tpu.memory_space<vmem>>, vector<1x8x32xf32>
    %218 = vector.shape_cast %217 : vector<1x8x32xf32> to vector<8x32xf32>
    %c1_60 = arith.constant 1 : index
    %c0_61 = arith.constant 0 : index
    %c0_62 = arith.constant 0 : index
    %219 = vector.load %arg7[%c1_60, %c0_61, %c0_62] : memref<2x8x32xf32, #tpu.memory_space<vmem>>, vector<1x8x32xf32>
    %220 = vector.shape_cast %219 : vector<1x8x32xf32> to vector<8x32xf32>
    %221 = arith.truncf %218 : vector<8x32xf32> to vector<8x32xbf16>
    %cst_63 = arith.constant dense<0.000000e+00> : vector<8x128xf32>
    %222 = tpu.matmul %221, %216, %cst_63 {dimension_numbers = #tpu.dot_dimension_numbers<[1], [0], [0], [1], [0, 0, 1, 1], [], []>} : vector<8x32xbf16>, vector<32x128xbf16>, vector<8x128xf32> -> vector<8x128xf32>
    %223 = arith.addf %208, %222 : vector<8x128xf32>
    %224 = arith.negf %223 : vector<8x128xf32>
    %225 = math.exp %224 : vector<8x128xf32>
    %cst_64 = arith.constant 1.000000e+00 : f32
    %226 = vector.broadcast %cst_64 : f32 to vector<8x128xf32>
    %227 = arith.addf %226, %225 : vector<8x128xf32>
    %228 = arith.divf %226, %227 : vector<8x128xf32>
    %229 = vector.extract_strided_slice %228 {offsets = [0, 0], sizes = [8, 32], strides = [1, 1]} : vector<8x128xf32> to vector<8x32xf32>
    %230 = vector.extract_strided_slice %228 {offsets = [0, 32], sizes = [8, 32], strides = [1, 1]} : vector<8x128xf32> to vector<8x32xf32>
    %231 = vector.extract_strided_slice %228 {offsets = [0, 64], sizes = [8, 32], strides = [1, 1]} : vector<8x128xf32> to vector<8x32xf32>
    %cst_65 = arith.constant 2.000000e+00 : f32
    %232 = vector.broadcast %cst_65 : f32 to vector<8x32xf32>
    %233 = arith.mulf %232, %231 : vector<8x32xf32>
    %cst_66 = arith.constant 1.000000e+00 : f32
    %234 = vector.broadcast %cst_66 : f32 to vector<8x32xf32>
    %235 = arith.subf %233, %234 : vector<8x32xf32>
    %236 = vector.extract_strided_slice %228 {offsets = [0, 96], sizes = [8, 32], strides = [1, 1]} : vector<8x128xf32> to vector<8x32xf32>
    %237 = arith.mulf %230, %220 : vector<8x32xf32>
    %238 = arith.mulf %229, %235 : vector<8x32xf32>
    %239 = arith.addf %237, %238 : vector<8x32xf32>
    %240 = math.tanh %239 : vector<8x32xf32>
    %241 = arith.mulf %236, %240 : vector<8x32xf32>
    %242 = arith.truncf %241 : vector<8x32xf32> to vector<8x32xbf16>
    %cst_67 = arith.constant dense<0.000000e+00> : vector<8x128xf32>
    %243 = tpu.matmul %242, %216, %cst_67 {dimension_numbers = #tpu.dot_dimension_numbers<[1], [0], [0], [1], [0, 0, 1, 1], [], []>} : vector<8x32xbf16>, vector<32x128xbf16>, vector<8x128xf32> -> vector<8x128xf32>
    %244 = arith.addf %209, %243 : vector<8x128xf32>
    %245 = arith.negf %244 : vector<8x128xf32>
    %246 = math.exp %245 : vector<8x128xf32>
    %cst_68 = arith.constant 1.000000e+00 : f32
    %247 = vector.broadcast %cst_68 : f32 to vector<8x128xf32>
    %248 = arith.addf %247, %246 : vector<8x128xf32>
    %249 = arith.divf %247, %248 : vector<8x128xf32>
    %250 = vector.extract_strided_slice %249 {offsets = [0, 0], sizes = [8, 32], strides = [1, 1]} : vector<8x128xf32> to vector<8x32xf32>
    %251 = vector.extract_strided_slice %249 {offsets = [0, 32], sizes = [8, 32], strides = [1, 1]} : vector<8x128xf32> to vector<8x32xf32>
    %252 = vector.extract_strided_slice %249 {offsets = [0, 64], sizes = [8, 32], strides = [1, 1]} : vector<8x128xf32> to vector<8x32xf32>
    %cst_69 = arith.constant 2.000000e+00 : f32
    %253 = vector.broadcast %cst_69 : f32 to vector<8x32xf32>
    %254 = arith.mulf %253, %252 : vector<8x32xf32>
    %cst_70 = arith.constant 1.000000e+00 : f32
    %255 = vector.broadcast %cst_70 : f32 to vector<8x32xf32>
    %256 = arith.subf %254, %255 : vector<8x32xf32>
    %257 = vector.extract_strided_slice %249 {offsets = [0, 96], sizes = [8, 32], strides = [1, 1]} : vector<8x128xf32> to vector<8x32xf32>
    %258 = arith.mulf %251, %239 : vector<8x32xf32>
    %259 = arith.mulf %250, %256 : vector<8x32xf32>
    %260 = arith.addf %258, %259 : vector<8x32xf32>
    %261 = math.tanh %260 : vector<8x32xf32>
    %262 = arith.mulf %257, %261 : vector<8x32xf32>
    %263 = arith.truncf %262 : vector<8x32xf32> to vector<8x32xbf16>
    %cst_71 = arith.constant dense<0.000000e+00> : vector<8x128xf32>
    %264 = tpu.matmul %263, %216, %cst_71 {dimension_numbers = #tpu.dot_dimension_numbers<[1], [0], [0], [1], [0, 0, 1, 1], [], []>} : vector<8x32xbf16>, vector<32x128xbf16>, vector<8x128xf32> -> vector<8x128xf32>
    %265 = arith.addf %210, %264 : vector<8x128xf32>
    %266 = arith.negf %265 : vector<8x128xf32>
    %267 = math.exp %266 : vector<8x128xf32>
    %cst_72 = arith.constant 1.000000e+00 : f32
    %268 = vector.broadcast %cst_72 : f32 to vector<8x128xf32>
    %269 = arith.addf %268, %267 : vector<8x128xf32>
    %270 = arith.divf %268, %269 : vector<8x128xf32>
    %271 = vector.extract_strided_slice %270 {offsets = [0, 0], sizes = [8, 32], strides = [1, 1]} : vector<8x128xf32> to vector<8x32xf32>
    %272 = vector.extract_strided_slice %270 {offsets = [0, 32], sizes = [8, 32], strides = [1, 1]} : vector<8x128xf32> to vector<8x32xf32>
    %273 = vector.extract_strided_slice %270 {offsets = [0, 64], sizes = [8, 32], strides = [1, 1]} : vector<8x128xf32> to vector<8x32xf32>
    %cst_73 = arith.constant 2.000000e+00 : f32
    %274 = vector.broadcast %cst_73 : f32 to vector<8x32xf32>
    %275 = arith.mulf %274, %273 : vector<8x32xf32>
    %cst_74 = arith.constant 1.000000e+00 : f32
    %276 = vector.broadcast %cst_74 : f32 to vector<8x32xf32>
    %277 = arith.subf %275, %276 : vector<8x32xf32>
    %278 = vector.extract_strided_slice %270 {offsets = [0, 96], sizes = [8, 32], strides = [1, 1]} : vector<8x128xf32> to vector<8x32xf32>
    %279 = arith.mulf %272, %260 : vector<8x32xf32>
    %280 = arith.mulf %271, %277 : vector<8x32xf32>
    %281 = arith.addf %279, %280 : vector<8x32xf32>
    %282 = math.tanh %281 : vector<8x32xf32>
    %283 = arith.mulf %278, %282 : vector<8x32xf32>
    %284 = arith.truncf %283 : vector<8x32xf32> to vector<8x32xbf16>
    %cst_75 = arith.constant dense<0.000000e+00> : vector<8x128xf32>
    %285 = tpu.matmul %284, %216, %cst_75 {dimension_numbers = #tpu.dot_dimension_numbers<[1], [0], [0], [1], [0, 0, 1, 1], [], []>} : vector<8x32xbf16>, vector<32x128xbf16>, vector<8x128xf32> -> vector<8x128xf32>
    %286 = arith.addf %211, %285 : vector<8x128xf32>
    %287 = arith.negf %286 : vector<8x128xf32>
    %288 = math.exp %287 : vector<8x128xf32>
    %cst_76 = arith.constant 1.000000e+00 : f32
    %289 = vector.broadcast %cst_76 : f32 to vector<8x128xf32>
    %290 = arith.addf %289, %288 : vector<8x128xf32>
    %291 = arith.divf %289, %290 : vector<8x128xf32>
    %292 = vector.extract_strided_slice %291 {offsets = [0, 0], sizes = [8, 32], strides = [1, 1]} : vector<8x128xf32> to vector<8x32xf32>
    %293 = vector.extract_strided_slice %291 {offsets = [0, 32], sizes = [8, 32], strides = [1, 1]} : vector<8x128xf32> to vector<8x32xf32>
    %294 = vector.extract_strided_slice %291 {offsets = [0, 64], sizes = [8, 32], strides = [1, 1]} : vector<8x128xf32> to vector<8x32xf32>
    %cst_77 = arith.constant 2.000000e+00 : f32
    %295 = vector.broadcast %cst_77 : f32 to vector<8x32xf32>
    %296 = arith.mulf %295, %294 : vector<8x32xf32>
    %cst_78 = arith.constant 1.000000e+00 : f32
    %297 = vector.broadcast %cst_78 : f32 to vector<8x32xf32>
    %298 = arith.subf %296, %297 : vector<8x32xf32>
    %299 = vector.extract_strided_slice %291 {offsets = [0, 96], sizes = [8, 32], strides = [1, 1]} : vector<8x128xf32> to vector<8x32xf32>
    %300 = arith.mulf %293, %281 : vector<8x32xf32>
    %301 = arith.mulf %292, %298 : vector<8x32xf32>
    %302 = arith.addf %300, %301 : vector<8x32xf32>
    %303 = math.tanh %302 : vector<8x32xf32>
    %304 = arith.mulf %299, %303 : vector<8x32xf32>
    %305 = arith.truncf %304 : vector<8x32xf32> to vector<8x32xbf16>
    %cst_79 = arith.constant dense<0.000000e+00> : vector<8x128xf32>
    %306 = tpu.matmul %305, %216, %cst_79 {dimension_numbers = #tpu.dot_dimension_numbers<[1], [0], [0], [1], [0, 0, 1, 1], [], []>} : vector<8x32xbf16>, vector<32x128xbf16>, vector<8x128xf32> -> vector<8x128xf32>
    %307 = arith.addf %212, %306 : vector<8x128xf32>
    %308 = arith.negf %307 : vector<8x128xf32>
    %309 = math.exp %308 : vector<8x128xf32>
    %cst_80 = arith.constant 1.000000e+00 : f32
    %310 = vector.broadcast %cst_80 : f32 to vector<8x128xf32>
    %311 = arith.addf %310, %309 : vector<8x128xf32>
    %312 = arith.divf %310, %311 : vector<8x128xf32>
    %313 = vector.extract_strided_slice %312 {offsets = [0, 0], sizes = [8, 32], strides = [1, 1]} : vector<8x128xf32> to vector<8x32xf32>
    %314 = vector.extract_strided_slice %312 {offsets = [0, 32], sizes = [8, 32], strides = [1, 1]} : vector<8x128xf32> to vector<8x32xf32>
    %315 = vector.extract_strided_slice %312 {offsets = [0, 64], sizes = [8, 32], strides = [1, 1]} : vector<8x128xf32> to vector<8x32xf32>
    %cst_81 = arith.constant 2.000000e+00 : f32
    %316 = vector.broadcast %cst_81 : f32 to vector<8x32xf32>
    %317 = arith.mulf %316, %315 : vector<8x32xf32>
    %cst_82 = arith.constant 1.000000e+00 : f32
    %318 = vector.broadcast %cst_82 : f32 to vector<8x32xf32>
    %319 = arith.subf %317, %318 : vector<8x32xf32>
    %320 = vector.extract_strided_slice %312 {offsets = [0, 96], sizes = [8, 32], strides = [1, 1]} : vector<8x128xf32> to vector<8x32xf32>
    %321 = arith.mulf %314, %302 : vector<8x32xf32>
    %322 = arith.mulf %313, %319 : vector<8x32xf32>
    %323 = arith.addf %321, %322 : vector<8x32xf32>
    %324 = math.tanh %323 : vector<8x32xf32>
    %325 = arith.mulf %320, %324 : vector<8x32xf32>
    %326 = arith.truncf %325 : vector<8x32xf32> to vector<8x32xbf16>
    %cst_83 = arith.constant dense<0.000000e+00> : vector<8x128xf32>
    %327 = tpu.matmul %326, %216, %cst_83 {dimension_numbers = #tpu.dot_dimension_numbers<[1], [0], [0], [1], [0, 0, 1, 1], [], []>} : vector<8x32xbf16>, vector<32x128xbf16>, vector<8x128xf32> -> vector<8x128xf32>
    %328 = arith.addf %213, %327 : vector<8x128xf32>
    %329 = arith.negf %328 : vector<8x128xf32>
    %330 = math.exp %329 : vector<8x128xf32>
    %cst_84 = arith.constant 1.000000e+00 : f32
    %331 = vector.broadcast %cst_84 : f32 to vector<8x128xf32>
    %332 = arith.addf %331, %330 : vector<8x128xf32>
    %333 = arith.divf %331, %332 : vector<8x128xf32>
    %334 = vector.extract_strided_slice %333 {offsets = [0, 0], sizes = [8, 32], strides = [1, 1]} : vector<8x128xf32> to vector<8x32xf32>
    %335 = vector.extract_strided_slice %333 {offsets = [0, 32], sizes = [8, 32], strides = [1, 1]} : vector<8x128xf32> to vector<8x32xf32>
    %336 = vector.extract_strided_slice %333 {offsets = [0, 64], sizes = [8, 32], strides = [1, 1]} : vector<8x128xf32> to vector<8x32xf32>
    %cst_85 = arith.constant 2.000000e+00 : f32
    %337 = vector.broadcast %cst_85 : f32 to vector<8x32xf32>
    %338 = arith.mulf %337, %336 : vector<8x32xf32>
    %cst_86 = arith.constant 1.000000e+00 : f32
    %339 = vector.broadcast %cst_86 : f32 to vector<8x32xf32>
    %340 = arith.subf %338, %339 : vector<8x32xf32>
    %341 = vector.extract_strided_slice %333 {offsets = [0, 96], sizes = [8, 32], strides = [1, 1]} : vector<8x128xf32> to vector<8x32xf32>
    %342 = arith.mulf %335, %323 : vector<8x32xf32>
    %343 = arith.mulf %334, %340 : vector<8x32xf32>
    %344 = arith.addf %342, %343 : vector<8x32xf32>
    %345 = math.tanh %344 : vector<8x32xf32>
    %346 = arith.mulf %341, %345 : vector<8x32xf32>
    %347 = arith.truncf %346 : vector<8x32xf32> to vector<8x32xbf16>
    %cst_87 = arith.constant dense<0.000000e+00> : vector<8x128xf32>
    %348 = tpu.matmul %347, %216, %cst_87 {dimension_numbers = #tpu.dot_dimension_numbers<[1], [0], [0], [1], [0, 0, 1, 1], [], []>} : vector<8x32xbf16>, vector<32x128xbf16>, vector<8x128xf32> -> vector<8x128xf32>
    %349 = arith.addf %214, %348 : vector<8x128xf32>
    %350 = arith.negf %349 : vector<8x128xf32>
    %351 = math.exp %350 : vector<8x128xf32>
    %cst_88 = arith.constant 1.000000e+00 : f32
    %352 = vector.broadcast %cst_88 : f32 to vector<8x128xf32>
    %353 = arith.addf %352, %351 : vector<8x128xf32>
    %354 = arith.divf %352, %353 : vector<8x128xf32>
    %355 = vector.extract_strided_slice %354 {offsets = [0, 0], sizes = [8, 32], strides = [1, 1]} : vector<8x128xf32> to vector<8x32xf32>
    %356 = vector.extract_strided_slice %354 {offsets = [0, 32], sizes = [8, 32], strides = [1, 1]} : vector<8x128xf32> to vector<8x32xf32>
    %357 = vector.extract_strided_slice %354 {offsets = [0, 64], sizes = [8, 32], strides = [1, 1]} : vector<8x128xf32> to vector<8x32xf32>
    %cst_89 = arith.constant 2.000000e+00 : f32
    %358 = vector.broadcast %cst_89 : f32 to vector<8x32xf32>
    %359 = arith.mulf %358, %357 : vector<8x32xf32>
    %cst_90 = arith.constant 1.000000e+00 : f32
    %360 = vector.broadcast %cst_90 : f32 to vector<8x32xf32>
    %361 = arith.subf %359, %360 : vector<8x32xf32>
    %362 = vector.extract_strided_slice %354 {offsets = [0, 96], sizes = [8, 32], strides = [1, 1]} : vector<8x128xf32> to vector<8x32xf32>
    %363 = arith.mulf %356, %344 : vector<8x32xf32>
    %364 = arith.mulf %355, %361 : vector<8x32xf32>
    %365 = arith.addf %363, %364 : vector<8x32xf32>
    %366 = math.tanh %365 : vector<8x32xf32>
    %367 = arith.mulf %362, %366 : vector<8x32xf32>
    %368 = arith.truncf %367 : vector<8x32xf32> to vector<8x32xbf16>
    %cst_91 = arith.constant dense<0.000000e+00> : vector<8x128xf32>
    %369 = tpu.matmul %368, %216, %cst_91 {dimension_numbers = #tpu.dot_dimension_numbers<[1], [0], [0], [1], [0, 0, 1, 1], [], []>} : vector<8x32xbf16>, vector<32x128xbf16>, vector<8x128xf32> -> vector<8x128xf32>
    %370 = arith.addf %215, %369 : vector<8x128xf32>
    %371 = arith.negf %370 : vector<8x128xf32>
    %372 = math.exp %371 : vector<8x128xf32>
    %cst_92 = arith.constant 1.000000e+00 : f32
    %373 = vector.broadcast %cst_92 : f32 to vector<8x128xf32>
    %374 = arith.addf %373, %372 : vector<8x128xf32>
    %375 = arith.divf %373, %374 : vector<8x128xf32>
    %376 = vector.extract_strided_slice %375 {offsets = [0, 0], sizes = [8, 32], strides = [1, 1]} : vector<8x128xf32> to vector<8x32xf32>
    %377 = vector.extract_strided_slice %375 {offsets = [0, 32], sizes = [8, 32], strides = [1, 1]} : vector<8x128xf32> to vector<8x32xf32>
    %378 = vector.extract_strided_slice %375 {offsets = [0, 64], sizes = [8, 32], strides = [1, 1]} : vector<8x128xf32> to vector<8x32xf32>
    %cst_93 = arith.constant 2.000000e+00 : f32
    %379 = vector.broadcast %cst_93 : f32 to vector<8x32xf32>
    %380 = arith.mulf %379, %378 : vector<8x32xf32>
    %cst_94 = arith.constant 1.000000e+00 : f32
    %381 = vector.broadcast %cst_94 : f32 to vector<8x32xf32>
    %382 = arith.subf %380, %381 : vector<8x32xf32>
    %383 = vector.extract_strided_slice %375 {offsets = [0, 96], sizes = [8, 32], strides = [1, 1]} : vector<8x128xf32> to vector<8x32xf32>
    %384 = arith.mulf %377, %365 : vector<8x32xf32>
    %385 = arith.mulf %376, %382 : vector<8x32xf32>
    %386 = arith.addf %384, %385 : vector<8x32xf32>
    %387 = math.tanh %386 : vector<8x32xf32>
    %388 = arith.mulf %383, %387 : vector<8x32xf32>
    %c1_95 = arith.constant 1 : index
    %c0_96 = arith.constant 0 : index
    %c0_97 = arith.constant 0 : index
    %389 = vector.load %arg9[%c1_95, %c0_96, %c0_97] : memref<2x8x32xf32, #tpu.memory_space<vmem>>, vector<1x8x32xf32>
    %390 = vector.shape_cast %389 : vector<1x8x32xf32> to vector<8x32xf32>
    %391 = vector.shape_cast %388 : vector<8x32xf32> to vector<1x8x32xf32>
    tpu.vector_store %arg9[%c1_95, %c0_96, %c0_97], %391 {strides = array<i32>} : memref<2x8x32xf32, #tpu.memory_space<vmem>>, vector<1x8x32xf32>,
    %c1_98 = arith.constant 1 : index
    %c0_99 = arith.constant 0 : index
    %c0_100 = arith.constant 0 : index
    %392 = vector.load %arg10[%c1_98, %c0_99, %c0_100] : memref<2x8x32xf32, #tpu.memory_space<vmem>>, vector<1x8x32xf32>
    %393 = vector.shape_cast %392 : vector<1x8x32xf32> to vector<8x32xf32>
    %394 = vector.shape_cast %386 : vector<8x32xf32> to vector<1x8x32xf32>
    tpu.vector_store %arg10[%c1_98, %c0_99, %c0_100], %394 {strides = array<i32>} : memref<2x8x32xf32, #tpu.memory_space<vmem>>, vector<1x8x32xf32>,
    %c0_101 = arith.constant 0 : index
    %c0_102 = arith.constant 0 : index
    %395 = vector.load %arg4[%c0_101, %c0_102] : memref<32x1xf32, #tpu.memory_space<vmem>>, vector<32x1xf32>
    %cst_103 = arith.constant dense<0.000000e+00> : vector<8x1xf32>
    %396 = tpu.matmul %388, %395, %cst_103 {dimension_numbers = #tpu.dot_dimension_numbers<[1], [0], [0], [1], [0, 0, 1, 1], [], []>} : vector<8x32xf32>, vector<32x1xf32>, vector<8x1xf32> -> vector<8x1xf32>
    %c0_104 = arith.constant 0 : index
    %c0_105 = arith.constant 0 : index
    %397 = vector.load %arg5[%c0_104, %c0_105] : memref<1x1xf32, #tpu.memory_space<vmem>>, vector<1x1xf32>
    %398 = vector.broadcast %397 : vector<1x1xf32> to vector<8x1xf32>
    %399 = arith.addf %396, %398 : vector<8x1xf32>
    %400 = arith.negf %399 : vector<8x1xf32>
    %401 = math.exp %400 : vector<8x1xf32>
    %cst_106 = arith.constant 1.000000e+00 : f32
    %402 = vector.broadcast %cst_106 : f32 to vector<8x1xf32>
    %403 = arith.addf %402, %401 : vector<8x1xf32>
    %404 = arith.divf %402, %403 : vector<8x1xf32>
    %c0_107 = arith.constant 0 : index
    %c0_108 = arith.constant 0 : index
    %405 = vector.load %arg8[%c0_107, %c0_108] : memref<8x1xf32, #tpu.memory_space<vmem>>, vector<8x1xf32>
    tpu.vector_store %arg8[%c0_107, %c0_108], %404 {strides = array<i32>} : memref<8x1xf32, #tpu.memory_space<vmem>>, vector<8x1xf32>,
    return
  }
}

</mosaic_0001>

<llo_original>
// kernel: senti_lstm_forward.1
$region0: #{senti_lstm_forward.1}
  #allocation0 [shape = 'u32[]', space=smem, size = 0x4, offset = 0x4, fixed_abs, tag = 'smem constant byte address 0x4 - core index']
  #allocation1 [shape = 'u32[144,128]{1,0:T(1,128)}', space=vmem, size = 0x12000, scoped, tag = 'internal scratch']
  #allocation2 [shape = 'f32[1,1]{1,0:T(1,128)S(1)}', space=vmem, size = 0x200, scoped, tag = 'scoped memory for senti_lstm_forward.1']
  %s0 = inlined_call_operand.vmem [shape: f32[64,128], index: 0, kind: input, shape index: {}]
  %s1 = inlined_call_operand.vmem [shape: bf16[32,256], index: 1, kind: input, shape index: {}]
  %s2 = inlined_call_operand.vmem [shape: bf16[32,128], index: 2, kind: input, shape index: {}]
  %s3 = inlined_call_operand.vmem [shape: f32[1,128], index: 3, kind: input, shape index: {}]
  %s4 = inlined_call_operand.vmem [shape: f32[32,1], index: 4, kind: input, shape index: {}]
  %s5 = inlined_call_operand.<no memory space> [shape: f32[1,1], index: 5, kind: input, shape index: {}]
  %s6 = inlined_call_operand.vmem [shape: f32[2,8,32], index: 6, kind: input, shape index: {}]
  %s7 = inlined_call_operand.vmem [shape: f32[2,8,32], index: 7, kind: input, shape index: {}]
  %s8 = inlined_call_operand.vmem [shape: f32[8,1], index: 8, kind: output, shape index: {0}]
  %s9 = inlined_call_operand.vmem [shape: f32[2,8,32], index: 9, kind: output, shape index: {1}]
  %s10 = inlined_call_operand.vmem [shape: f32[2,8,32], index: 10, kind: output, shape index: {2}]
  %11 = xla_tuple %s8, %s9, %s10
  %s12 = sld [smem:[#allocation0]]
  $region58: #{senti_lstm_forward.1} parent=0
    _
  %s14 = ssub.s32 1, %s12
  %s15 = scalar_select 0, %s14, %s12
  %v16 = vstv %s5
  %17 = vst [vmem:[#allocation2] sm:$0x1] %v16
  // Predicated region
  $region2: #{senti_lstm_forward.1} parent=0 // pred_check
    _
  $region3: #{senti_lstm_forward.1} parent=0 // pred_check_branch
    %19 = sbr.rel (0) target = $region5
  $region4: #{senti_lstm_forward.1} parent=0 // pred_region
    _
  $region5: #{senti_lstm_forward.1} parent=0 // pred_fallthru
    _
  // Predicated region
  $region6: #{senti_lstm_forward.1} parent=0 // pred_check
    _
  $region7: #{senti_lstm_forward.1} parent=0 // pred_check_branch
    %21 = sbr.rel (0) target = $region9
  $region8: #{senti_lstm_forward.1} parent=0 // pred_region
    _
  $region9: #{senti_lstm_forward.1} parent=0 // pred_fallthru
    _
  // Predicated region
  $region10: #{senti_lstm_forward.1} parent=0 // pred_check
    _
  $region11: #{senti_lstm_forward.1} parent=0 // pred_check_branch
    %23 = sbr.rel (0) target = $region13
  $region12: #{senti_lstm_forward.1} parent=0 // pred_region
    _
  $region13: #{senti_lstm_forward.1} parent=0 // pred_fallthru
    _
  // Predicated region
  $region14: #{senti_lstm_forward.1} parent=0 // pred_check
    _
  $region15: #{senti_lstm_forward.1} parent=0 // pred_check_branch
    %25 = sbr.rel (0) target = $region17
  $region16: #{senti_lstm_forward.1} parent=0 // pred_region
    _
  $region17: #{senti_lstm_forward.1} parent=0 // pred_fallthru
    _
  // Predicated region
  $region18: #{senti_lstm_forward.1} parent=0 // pred_check
    _
  $region19: #{senti_lstm_forward.1} parent=0 // pred_check_branch
    %27 = sbr.rel (0) target = $region21
  $region20: #{senti_lstm_forward.1} parent=0 // pred_region
    _
  $region21: #{senti_lstm_forward.1} parent=0 // pred_fallthru
    _
  // Predicated region
  $region22: #{senti_lstm_forward.1} parent=0 // pred_check
    _
  $region23: #{senti_lstm_forward.1} parent=0 // pred_check_branch
    %29 = sbr.rel (0) target = $region25
  $region24: #{senti_lstm_forward.1} parent=0 // pred_region
    _
  $region25: #{senti_lstm_forward.1} parent=0 // pred_fallthru
    _
  // Predicated region
  $region26: #{senti_lstm_forward.1} parent=0 // pred_check
    _
  $region27: #{senti_lstm_forward.1} parent=0 // pred_check_branch
    %31 = sbr.rel (0) target = $region29
  $region28: #{senti_lstm_forward.1} parent=0 // pred_region
    _
  $region29: #{senti_lstm_forward.1} parent=0 // pred_fallthru
    _
  // Predicated region
  $region30: #{senti_lstm_forward.1} parent=0 // pred_check
    _
  $region31: #{senti_lstm_forward.1} parent=0 // pred_check_branch
    %33 = sbr.rel (0) target = $region33
  $region32: #{senti_lstm_forward.1} parent=0 // pred_region
    _
  $region33: #{senti_lstm_forward.1} parent=0 // pred_fallthru
    _
  %v35 = vld [vmem:[%s1] sm:$0xff]
  %v36 = vld [vmem:[%s1 + $0x8] sm:$0xff]
  %v37 = vld [vmem:[%s1 + $0x10] sm:$0xff]
  %v38 = vld [vmem:[%s1 + $0x18] sm:$0xff]
  %v39 = vld [vmem:[%s6] sm:$0xff]
  %v40 = vld [vmem:[%s7] sm:$0xff]
  %v41 = vld [vmem:[%s0] sm:$0xff]
  %v42 = vpack.c.bf16 %v39, %v39
  %v47 = vunpack.c.l.b16 %v35
  %v48 = vunpack.c.h.b16 %v35
  %v49 = vunpack.c.l.b16 %v36
  %v50 = vunpack.c.h.b16 %v36
  %v51 = vunpack.c.l.b16 %v37
  %v52 = vunpack.c.h.b16 %v37
  %v53 = vunpack.c.l.b16 %v38
  %v54 = vunpack.c.h.b16 %v38
  %v55 = vpack.c.b16 %v49, %v47
  %v56 = vpack.c.b16 %v50, %v48
  %v57 = vpack.c.b16 %v53, %v51
  %v58 = vpack.c.b16 %v54, %v52
  %vm63 = vcmask 261120
  %v65 = vsel %vm63, %v42, 0
  %67 = vmatprep.subr.bf16.mxu0 %v56
  %68 = vmatpush1.bf16.msra.mxu0 %v55
  %69 = vmatprep.subr.bf16.mxu0 %v58
  %70 = vmatpush1.bf16.msra.mxu0 %v57
  %71 = vmatprep.subr.bf16.mxu0 0
  %72 = vmatpush1.bf16.msra.mxu0 0
  %73 = vmatprep.subr.bf16.mxu0 0
  %74 = vmatpush1.bf16.msra.mxu0 0
  %75 = vmatprep.subr.bf16.mxu0 0
  %76 = vmatpush1.bf16.msra.mxu0 0
  %77 = vmatprep.subr.bf16.mxu0 0
  %78 = vmatpush1.bf16.msra.mxu0 0
  %79 = vmatprep.subr.bf16.mxu0 0
  %80 = vmatpush1.bf16.msra.mxu0 0
  %81 = vmatprep.subr.bf16.mxu0 0
  %82 = vmatpush1.bf16.msra.mxu0 0
  %83 = vmatprep.subr.bf16.mxu0 0
  %84 = vmatpush1.bf16.msra.mxu0 0
  %85 = vmatprep.subr.bf16.mxu0 0
  %86 = vmatpush1.bf16.msra.mxu0 0
  %87 = vmatprep.subr.bf16.mxu0 0
  %88 = vmatpush1.bf16.msra.mxu0 0
  %89 = vmatprep.subr.bf16.mxu0 0
  %90 = vmatpush1.bf16.msra.mxu0 0
  %91 = vmatprep.subr.bf16.mxu0 0
  %92 = vmatpush1.bf16.msra.mxu0 0
  %93 = vmatprep.subr.bf16.mxu0 0
  %94 = vmatpush1.bf16.msra.mxu0 0
  %95 = vmatprep.subr.bf16.mxu0 0
  %96 = vmatpush1.bf16.msra.mxu0 0
  %97 = vmatprep.subr.bf16.mxu0 0
  %98 = vmatpush1.bf16.msra.mxu0 0
  %99 = vmatprep.mubr.bf16.mxu0 0
  %100 = vmatmul.mubr.bf16.gmra.mrb[0].mxu0 %v65
  %v101 = vpop.f32.mrb[0].mxu0
  %v102 = vadd.f32 0.0, %v101
  %v103 = vpop.f32.mrb[0].mxu0
  %v104 = vpop.f32.mrb[0].mxu0
  %v105 = vpop.f32.mrb[0].mxu0
  %106 = vdwg.mxu0
  %v107 = vadd.f32 %v41, %v102
  %v108 = vxor.u32 %v107, 2147483648
  %v109 = vmul.f32 %v108, 1.442695
  %v110 = vpow.pop %v109
  %v111 = vadd.f32 %v110, 1.0
  %v112 = vrcp.pop %v111
  %v113 = vmul.f32 1.0, %v112
  %v114 = vmul.f32 %v113, 2.0
  %v115 = vsub.f32 %v114, 1.0
  %117 = vrot.lane.b32.xlu0 %v40, 32
  %v118 = vpop.permute.xlu0 %117
  %v120 = vmul.f32 %v113, %v118
  %122 = vrot.lane.b32.xlu0 %v115, 64
  %v123 = vpop.permute.xlu0 %122
  %v125 = vmul.f32 %v113, %v123
  %127 = vrot.lane.b32.xlu0 %v125, 32
  %v128 = vpop.permute.xlu0 %127
  %v130 = vadd.f32 %v120, %v128
  %v131 = vtanh.pop %v130
  %133 = vrot.lane.b32.xlu0 %v131, 64
  %v134 = vpop.permute.xlu0 %133
  %v136 = vmul.f32 %v113, %v134
  %v137 = vld [vmem:[%s0 + $0x8] sm:$0xff]
  %v138 = vpack.c.bf16 %v136, %v136
  %140 = vrot.lane.b32.xlu0 %v138, 32
  %v141 = vpop.permute.xlu0 %140
  %v143 = vsel %vm63, %v141, 0
  %145 = vmatprep.subr.bf16.mxu0 %v56
  %146 = vmatpush1.bf16.msra.mxu0 %v55
  %147 = vmatprep.subr.bf16.mxu0 %v58
  %148 = vmatpush1.bf16.msra.mxu0 %v57
  %149 = vmatprep.subr.bf16.mxu0 0
  %150 = vmatpush1.bf16.msra.mxu0 0
  %151 = vmatprep.subr.bf16.mxu0 0
  %152 = vmatpush1.bf16.msra.mxu0 0
  %153 = vmatprep.subr.bf16.mxu0 0
  %154 = vmatpush1.bf16.msra.mxu0 0
  %155 = vmatprep.subr.bf16.mxu0 0
  %156 = vmatpush1.bf16.msra.mxu0 0
  %157 = vmatprep.subr.bf16.mxu0 0
  %158 = vmatpush1.bf16.msra.mxu0 0
  %159 = vmatprep.subr.bf16.mxu0 0
  %160 = vmatpush1.bf16.msra.mxu0 0
  %161 = vmatprep.subr.bf16.mxu0 0
  %162 = vmatpush1.bf16.msra.mxu0 0
  %163 = vmatprep.subr.bf16.mxu0 0
  %164 = vmatpush1.bf16.msra.mxu0 0
  %165 = vmatprep.subr.bf16.mxu0 0
  %166 = vmatpush1.bf16.msra.mxu0 0
  %167 = vmatprep.subr.bf16.mxu0 0
  %168 = vmatpush1.bf16.msra.mxu0 0
  %169 = vmatprep.subr.bf16.mxu0 0
  %170 = vmatpush1.bf16.msra.mxu0 0
  %171 = vmatprep.subr.bf16.mxu0 0
  %172 = vmatpush1.bf16.msra.mxu0 0
  %173 = vmatprep.subr.bf16.mxu0 0
  %174 = vmatpush1.bf16.msra.mxu0 0
  %175 = vmatprep.subr.bf16.mxu0 0
  %176 = vmatpush1.bf16.msra.mxu0 0
  %177 = vmatprep.mubr.bf16.mxu0 0
  %178 = vmatmul.mubr.bf16.gmra.mrb[0].mxu0 %v143
  %v179 = vpop.f32.mrb[0].mxu0
  %v180 = vadd.f32 0.0, %v179
  %v181 = vpop.f32.mrb[0].mxu0
  %v182 = vadd.f32 0.0, %v181
  %v183 = vpop.f32.mrb[0].mxu0
  %v184 = vpop.f32.mrb[0].mxu0
  %185 = vdwg.mxu0
  %v186 = vadd.f32 %v137, %v180
  %v187 = vxor.u32 %v186, 2147483648
  %v188 = vmul.f32 %v187, 1.442695
  %v189 = vpow.pop %v188
  %v190 = vadd.f32 %v189, 1.0
  %v191 = vrcp.pop %v190
  %v192 = vmul.f32 1.0, %v191
  %v193 = vmul.f32 %v192, 2.0
  %v194 = vsub.f32 %v193, 1.0
  %v195 = vmul.f32 %v192, %v130
  %197 = vrot.lane.b32.xlu0 %v194, 64
  %v198 = vpop.permute.xlu0 %197
  %v200 = vmul.f32 %v192, %v198
  %202 = vrot.lane.b32.xlu0 %v200, 32
  %v203 = vpop.permute.xlu0 %202
  %v205 = vadd.f32 %v195, %v203
  %v206 = vtanh.pop %v205
  %208 = vrot.lane.b32.xlu0 %v206, 64
  %v209 = vpop.permute.xlu0 %208
  %v211 = vmul.f32 %v192, %v209
  %v212 = vld [vmem:[%s0 + $0x10] sm:$0xff]
  %v213 = vpack.c.bf16 %v211, %v211
  %215 = vrot.lane.b32.xlu0 %v213, 32
  %v216 = vpop.permute.xlu0 %215
  %v218 = vsel %vm63, %v216, 0
  %220 = vmatprep.subr.bf16.mxu0 %v56
  %221 = vmatpush1.bf16.msra.mxu0 %v55
  %222 = vmatprep.subr.bf16.mxu0 %v58
  %223 = vmatpush1.bf16.msra.mxu0 %v57
  %224 = vmatprep.subr.bf16.mxu0 0
  %225 = vmatpush1.bf16.msra.mxu0 0
  %226 = vmatprep.subr.bf16.mxu0 0
  %227 = vmatpush1.bf16.msra.mxu0 0
  %228 = vmatprep.subr.bf16.mxu0 0
  %229 = vmatpush1.bf16.msra.mxu0 0
  %230 = vmatprep.subr.bf16.mxu0 0
  %231 = vmatpush1.bf16.msra.mxu0 0
  %232 = vmatprep.subr.bf16.mxu0 0
  %233 = vmatpush1.bf16.msra.mxu0 0
  %234 = vmatprep.subr.bf16.mxu0 0
  %235 = vmatpush1.bf16.msra.mxu0 0
  %236 = vmatprep.subr.bf16.mxu0 0
  %237 = vmatpush1.bf16.msra.mxu0 0
  %238 = vmatprep.subr.bf16.mxu0 0
  %239 = vmatpush1.bf16.msra.mxu0 0
  %240 = vmatprep.subr.bf16.mxu0 0
  %241 = vmatpush1.bf16.msra.mxu0 0
  %242 = vmatprep.subr.bf16.mxu0 0
  %243 = vmatpush1.bf16.msra.mxu0 0
  %244 = vmatprep.subr.bf16.mxu0 0
  %245 = vmatpush1.bf16.msra.mxu0 0
  %246 = vmatprep.subr.bf16.mxu0 0
  %247 = vmatpush1.bf16.msra.mxu0 0
  %248 = vmatprep.subr.bf16.mxu0 0
  %249 = vmatpush1.bf16.msra.mxu0 0
  %250 = vmatprep.subr.bf16.mxu0 0
  %251 = vmatpush1.bf16.msra.mxu0 0
  %252 = vmatprep.mubr.bf16.mxu0 0
  %253 = vmatmul.mubr.bf16.gmra.mrb[0].mxu0 %v218
  %v254 = vpop.f32.mrb[0].mxu0
  %v255 = vadd.f32 0.0, %v254
  %v256 = vpop.f32.mrb[0].mxu0
  %v257 = vadd.f32 0.0, %v256
  %v258 = vpop.f32.mrb[0].mxu0
  %v259 = vpop.f32.mrb[0].mxu0
  %260 = vdwg.mxu0
  %v261 = vadd.f32 %v212, %v255
  %v262 = vxor.u32 %v261, 2147483648
  %v263 = vmul.f32 %v262, 1.442695
  %v264 = vpow.pop %v263
  %v265 = vadd.f32 %v264, 1.0
  %v266 = vrcp.pop %v265
  %v267 = vmul.f32 1.0, %v266
  %v268 = vmul.f32 %v267, 2.0
  %v269 = vsub.f32 %v268, 1.0
  %v270 = vmul.f32 %v267, %v205
  %272 = vrot.lane.b32.xlu0 %v269, 64
  %v273 = vpop.permute.xlu0 %272
  %v275 = vmul.f32 %v267, %v273
  %277 = vrot.lane.b32.xlu0 %v275, 32
  %v278 = vpop.permute.xlu0 %277
  %v280 = vadd.f32 %v270, %v278
  %v281 = vtanh.pop %v280
  %283 = vrot.lane.b32.xlu0 %v281, 64
  %v284 = vpop.permute.xlu0 %283
  %v286 = vmul.f32 %v267, %v284
  %v287 = vld [vmem:[%s0 + $0x18] sm:$0xff]
  %v288 = vpack.c.bf16 %v286, %v286
  %290 = vrot.lane.b32.xlu0 %v288, 32
  %v291 = vpop.permute.xlu0 %290
  %v293 = vsel %vm63, %v291, 0
  %295 = vmatprep.subr.bf16.mxu0 %v56
  %296 = vmatpush1.bf16.msra.mxu0 %v55
  %297 = vmatprep.subr.bf16.mxu0 %v58
  %298 = vmatpush1.bf16.msra.mxu0 %v57
  %299 = vmatprep.subr.bf16.mxu0 0
  %300 = vmatpush1.bf16.msra.mxu0 0
  %301 = vmatprep.subr.bf16.mxu0 0
  %302 = vmatpush1.bf16.msra.mxu0 0
  %303 = vmatprep.subr.bf16.mxu0 0
  %304 = vmatpush1.bf16.msra.mxu0 0
  %305 = vmatprep.subr.bf16.mxu0 0
  %306 = vmatpush1.bf16.msra.mxu0 0
  %307 = vmatprep.subr.bf16.mxu0 0
  %308 = vmatpush1.bf16.msra.mxu0 0
  %309 = vmatprep.subr.bf16.mxu0 0
  %310 = vmatpush1.bf16.msra.mxu0 0
  %311 = vmatprep.subr.bf16.mxu0 0
  %312 = vmatpush1.bf16.msra.mxu0 0
  %313 = vmatprep.subr.bf16.mxu0 0
  %314 = vmatpush1.bf16.msra.mxu0 0
  %315 = vmatprep.subr.bf16.mxu0 0
  %316 = vmatpush1.bf16.msra.mxu0 0
  %317 = vmatprep.subr.bf16.mxu0 0
  %318 = vmatpush1.bf16.msra.mxu0 0
  %319 = vmatprep.subr.bf16.mxu0 0
  %320 = vmatpush1.bf16.msra.mxu0 0
  %321 = vmatprep.subr.bf16.mxu0 0
  %322 = vmatpush1.bf16.msra.mxu0 0
  %323 = vmatprep.subr.bf16.mxu0 0
  %324 = vmatpush1.bf16.msra.mxu0 0
  %325 = vmatprep.subr.bf16.mxu0 0
  %326 = vmatpush1.bf16.msra.mxu0 0
  %327 = vmatprep.mubr.bf16.mxu0 0
  %328 = vmatmul.mubr.bf16.gmra.mrb[0].mxu0 %v293
  %v329 = vpop.f32.mrb[0].mxu0
  %v330 = vadd.f32 0.0, %v329
  %v331 = vpop.f32.mrb[0].mxu0
  %v332 = vadd.f32 0.0, %v331
  %v333 = vpop.f32.mrb[0].mxu0
  %v334 = vpop.f32.mrb[0].mxu0
  %335 = vdwg.mxu0
  %v336 = vadd.f32 %v287, %v330
  %v337 = vxor.u32 %v336, 2147483648
  %v338 = vmul.f32 %v337, 1.442695
  %v339 = vpow.pop %v338
  %v340 = vadd.f32 %v339, 1.0
  %v341 = vrcp.pop %v340
  %v342 = vmul.f32 1.0, %v341
  %v343 = vmul.f32 %v342, 2.0
  %v344 = vsub.f32 %v343, 1.0
  %v345 = vmul.f32 %v342, %v280
  %347 = vrot.lane.b32.xlu0 %v344, 64
  %v348 = vpop.permute.xlu0 %347
  %v350 = vmul.f32 %v342, %v348
  %352 = vrot.lane.b32.xlu0 %v350, 32
  %v353 = vpop.permute.xlu0 %352
  %v355 = vadd.f32 %v345, %v353
  %v356 = vtanh.pop %v355
  %358 = vrot.lane.b32.xlu0 %v356, 64
  %v359 = vpop.permute.xlu0 %358
  %v361 = vmul.f32 %v342, %v359
  %v362 = vld [vmem:[%s0 + $0x20] sm:$0xff]
  %v363 = vpack.c.bf16 %v361, %v361
  %365 = vrot.lane.b32.xlu0 %v363, 32
  %v366 = vpop.permute.xlu0 %365
  %v368 = vsel %vm63, %v366, 0
  %370 = vmatprep.subr.bf16.mxu0 %v56
  %371 = vmatpush1.bf16.msra.mxu0 %v55
  %372 = vmatprep.subr.bf16.mxu0 %v58
  %373 = vmatpush1.bf16.msra.mxu0 %v57
  %374 = vmatprep.subr.bf16.mxu0 0
  %375 = vmatpush1.bf16.msra.mxu0 0
  %376 = vmatprep.subr.bf16.mxu0 0
  %377 = vmatpush1.bf16.msra.mxu0 0
  %378 = vmatprep.subr.bf16.mxu0 0
  %379 = vmatpush1.bf16.msra.mxu0 0
  %380 = vmatprep.subr.bf16.mxu0 0
  %381 = vmatpush1.bf16.msra.mxu0 0
  %382 = vmatprep.subr.bf16.mxu0 0
  %383 = vmatpush1.bf16.msra.mxu0 0
  %384 = vmatprep.subr.bf16.mxu0 0
  %385 = vmatpush1.bf16.msra.mxu0 0
  %386 = vmatprep.subr.bf16.mxu0 0
  %387 = vmatpush1.bf16.msra.mxu0 0
  %388 = vmatprep.subr.bf16.mxu0 0
  %389 = vmatpush1.bf16.msra.mxu0 0
  %390 = vmatprep.subr.bf16.mxu0 0
  %391 = vmatpush1.bf16.msra.mxu0 0
  %392 = vmatprep.subr.bf16.mxu0 0
  %393 = vmatpush1.bf16.msra.mxu0 0
  %394 = vmatprep.subr.bf16.mxu0 0
  %395 = vmatpush1.bf16.msra.mxu0 0
  %396 = vmatprep.subr.bf16.mxu0 0
  %397 = vmatpush1.bf16.msra.mxu0 0
  %398 = vmatprep.subr.bf16.mxu0 0
  %399 = vmatpush1.bf16.msra.mxu0 0
  %400 = vmatprep.subr.bf16.mxu0 0
  %401 = vmatpush1.bf16.msra.mxu0 0
  %402 = vmatprep.mubr.bf16.mxu0 0
  %403 = vmatmul.mubr.bf16.gmra.mrb[0].mxu0 %v368
  %v404 = vpop.f32.mrb[0].mxu0
  %v405 = vadd.f32 0.0, %v404
  %v406 = vpop.f32.mrb[0].mxu0
  %v407 = vadd.f32 0.0, %v406
  %v408 = vpop.f32.mrb[0].mxu0
  %v409 = vpop.f32.mrb[0].mxu0
  %410 = vdwg.mxu0
  %v411 = vadd.f32 %v362, %v405
  %v412 = vxor.u32 %v411, 2147483648
  %v413 = vmul.f32 %v412, 1.442695
  %v414 = vpow.pop %v413
  %v415 = vadd.f32 %v414, 1.0
  %v416 = vrcp.pop %v415
  %v417 = vmul.f32 1.0, %v416
  %v418 = vmul.f32 %v417, 2.0
  %v419 = vsub.f32 %v418, 1.0
  %v420 = vmul.f32 %v417, %v355
  %422 = vrot.lane.b32.xlu0 %v419, 64
  %v423 = vpop.permute.xlu0 %422
  %v425 = vmul.f32 %v417, %v423
  %427 = vrot.lane.b32.xlu0 %v425, 32
  %v428 = vpop.permute.xlu0 %427
  %v430 = vadd.f32 %v420, %v428
  %v431 = vtanh.pop %v430
  %433 = vrot.lane.b32.xlu0 %v431, 64
  %v434 = vpop.permute.xlu0 %433
  %v436 = vmul.f32 %v417, %v434
  %v437 = vld [vmem:[%s0 + $0x28] sm:$0xff]
  %v438 = vpack.c.bf16 %v436, %v436
  %440 = vrot.lane.b32.xlu0 %v438, 32
  %v441 = vpop.permute.xlu0 %440
  %v443 = vsel %vm63, %v441, 0
  %445 = vmatprep.subr.bf16.mxu0 %v56
  %446 = vmatpush1.bf16.msra.mxu0 %v55
  %447 = vmatprep.subr.bf16.mxu0 %v58
  %448 = vmatpush1.bf16.msra.mxu0 %v57
  %449 = vmatprep.subr.bf16.mxu0 0
  %450 = vmatpush1.bf16.msra.mxu0 0
  %451 = vmatprep.subr.bf16.mxu0 0
  %452 = vmatpush1.bf16.msra.mxu0 0
  %453 = vmatprep.subr.bf16.mxu0 0
  %454 = vmatpush1.bf16.msra.mxu0 0
  %455 = vmatprep.subr.bf16.mxu0 0
  %456 = vmatpush1.bf16.msra.mxu0 0
  %457 = vmatprep.subr.bf16.mxu0 0
  %458 = vmatpush1.bf16.msra.mxu0 0
  %459 = vmatprep.subr.bf16.mxu0 0
  %460 = vmatpush1.bf16.msra.mxu0 0
  %461 = vmatprep.subr.bf16.mxu0 0
  %462 = vmatpush1.bf16.msra.mxu0 0
  %463 = vmatprep.subr.bf16.mxu0 0
  %464 = vmatpush1.bf16.msra.mxu0 0
  %465 = vmatprep.subr.bf16.mxu0 0
  %466 = vmatpush1.bf16.msra.mxu0 0
  %467 = vmatprep.subr.bf16.mxu0 0
  %468 = vmatpush1.bf16.msra.mxu0 0
  %469 = vmatprep.subr.bf16.mxu0 0
  %470 = vmatpush1.bf16.msra.mxu0 0
  %471 = vmatprep.subr.bf16.mxu0 0
  %472 = vmatpush1.bf16.msra.mxu0 0
  %473 = vmatprep.subr.bf16.mxu0 0
  %474 = vmatpush1.bf16.msra.mxu0 0
  %475 = vmatprep.subr.bf16.mxu0 0
  %476 = vmatpush1.bf16.msra.mxu0 0
  %477 = vmatprep.mubr.bf16.mxu0 0
  %478 = vmatmul.mubr.bf16.gmra.mrb[0].mxu0 %v443
  %v479 = vpop.f32.mrb[0].mxu0
  %v480 = vadd.f32 0.0, %v479
  %v481 = vpop.f32.mrb[0].mxu0
  %v482 = vadd.f32 0.0, %v481
  %v483 = vpop.f32.mrb[0].mxu0
  %v484 = vpop.f32.mrb[0].mxu0
  %485 = vdwg.mxu0
  %v486 = vadd.f32 %v437, %v480
  %v487 = vxor.u32 %v486, 2147483648
  %v488 = vmul.f32 %v487, 1.442695
  %v489 = vpow.pop %v488
  %v490 = vadd.f32 %v489, 1.0
  %v491 = vrcp.pop %v490
  %v492 = vmul.f32 1.0, %v491
  %v493 = vmul.f32 %v492, 2.0
  %v494 = vsub.f32 %v493, 1.0
  %v495 = vmul.f32 %v492, %v430
  %497 = vrot.lane.b32.xlu0 %v494, 64
  %v498 = vpop.permute.xlu0 %497
  %v500 = vmul.f32 %v492, %v498
  %502 = vrot.lane.b32.xlu0 %v500, 32
  %v503 = vpop.permute.xlu0 %502
  %v505 = vadd.f32 %v495, %v503
  %v506 = vtanh.pop %v505
  %508 = vrot.lane.b32.xlu0 %v506, 64
  %v509 = vpop.permute.xlu0 %508
  %v511 = vmul.f32 %v492, %v509
  %v512 = vld [vmem:[%s0 + $0x30] sm:$0xff]
  %v513 = vpack.c.bf16 %v511, %v511
  %515 = vrot.lane.b32.xlu0 %v513, 32
  %v516 = vpop.permute.xlu0 %515
  %v518 = vsel %vm63, %v516, 0
  %520 = vmatprep.subr.bf16.mxu0 %v56
  %521 = vmatpush1.bf16.msra.mxu0 %v55
  %522 = vmatprep.subr.bf16.mxu0 %v58
  %523 = vmatpush1.bf16.msra.mxu0 %v57
  %524 = vmatprep.subr.bf16.mxu0 0
  %525 = vmatpush1.bf16.msra.mxu0 0
  %526 = vmatprep.subr.bf16.mxu0 0
  %527 = vmatpush1.bf16.msra.mxu0 0
  %528 = vmatprep.subr.bf16.mxu0 0
  %529 = vmatpush1.bf16.msra.mxu0 0
  %530 = vmatprep.subr.bf16.mxu0 0
  %531 = vmatpush1.bf16.msra.mxu0 0
  %532 = vmatprep.subr.bf16.mxu0 0
  %533 = vmatpush1.bf16.msra.mxu0 0
  %534 = vmatprep.subr.bf16.mxu0 0
  %535 = vmatpush1.bf16.msra.mxu0 0
  %536 = vmatprep.subr.bf16.mxu0 0
  %537 = vmatpush1.bf16.msra.mxu0 0
  %538 = vmatprep.subr.bf16.mxu0 0
  %539 = vmatpush1.bf16.msra.mxu0 0
  %540 = vmatprep.subr.bf16.mxu0 0
  %541 = vmatpush1.bf16.msra.mxu0 0
  %542 = vmatprep.subr.bf16.mxu0 0
  %543 = vmatpush1.bf16.msra.mxu0 0
  %544 = vmatprep.subr.bf16.mxu0 0
  %545 = vmatpush1.bf16.msra.mxu0 0
  %546 = vmatprep.subr.bf16.mxu0 0
  %547 = vmatpush1.bf16.msra.mxu0 0
  %548 = vmatprep.subr.bf16.mxu0 0
  %549 = vmatpush1.bf16.msra.mxu0 0
  %550 = vmatprep.subr.bf16.mxu0 0
  %551 = vmatpush1.bf16.msra.mxu0 0
  %552 = vmatprep.mubr.bf16.mxu0 0
  %553 = vmatmul.mubr.bf16.gmra.mrb[0].mxu0 %v518
  %v554 = vpop.f32.mrb[0].mxu0
  %v555 = vadd.f32 0.0, %v554
  %v556 = vpop.f32.mrb[0].mxu0
  %v557 = vadd.f32 0.0, %v556
  %v558 = vpop.f32.mrb[0].mxu0
  %v559 = vpop.f32.mrb[0].mxu0
  %560 = vdwg.mxu0
  %v561 = vadd.f32 %v512, %v555
  %v562 = vxor.u32 %v561, 2147483648
  %v563 = vmul.f32 %v562, 1.442695
  %v564 = vpow.pop %v563
  %v565 = vadd.f32 %v564, 1.0
  %v566 = vrcp.pop %v565
  %v567 = vmul.f32 1.0, %v566
  %v568 = vmul.f32 %v567, 2.0
  %v569 = vsub.f32 %v568, 1.0
  %v570 = vmul.f32 %v567, %v505
  %572 = vrot.lane.b32.xlu0 %v569, 64
  %v573 = vpop.permute.xlu0 %572
  %v575 = vmul.f32 %v567, %v573
  %577 = vrot.lane.b32.xlu0 %v575, 32
  %v578 = vpop.permute.xlu0 %577
  %v580 = vadd.f32 %v570, %v578
  %v581 = vtanh.pop %v580
  %583 = vrot.lane.b32.xlu0 %v581, 64
  %v584 = vpop.permute.xlu0 %583
  %v586 = vmul.f32 %v567, %v584
  %v587 = vld [vmem:[%s0 + $0x38] sm:$0xff]
  %v588 = vpack.c.bf16 %v586, %v586
  %590 = vrot.lane.b32.xlu0 %v588, 32
  %v591 = vpop.permute.xlu0 %590
  %v593 = vsel %vm63, %v591, 0
  %595 = vmatprep.subr.bf16.mxu0 %v56
  %596 = vmatpush1.bf16.msra.mxu0 %v55
  %597 = vmatprep.subr.bf16.mxu0 %v58
  %598 = vmatpush1.bf16.msra.mxu0 %v57
  %599 = vmatprep.subr.bf16.mxu0 0
  %600 = vmatpush1.bf16.msra.mxu0 0
  %601 = vmatprep.subr.bf16.mxu0 0
  %602 = vmatpush1.bf16.msra.mxu0 0
  %603 = vmatprep.subr.bf16.mxu0 0
  %604 = vmatpush1.bf16.msra.mxu0 0
  %605 = vmatprep.subr.bf16.mxu0 0
  %606 = vmatpush1.bf16.msra.mxu0 0
  %607 = vmatprep.subr.bf16.mxu0 0
  %608 = vmatpush1.bf16.msra.mxu0 0
  %609 = vmatprep.subr.bf16.mxu0 0
  %610 = vmatpush1.bf16.msra.mxu0 0
  %611 = vmatprep.subr.bf16.mxu0 0
  %612 = vmatpush1.bf16.msra.mxu0 0
  %613 = vmatprep.subr.bf16.mxu0 0
  %614 = vmatpush1.bf16.msra.mxu0 0
  %615 = vmatprep.subr.bf16.mxu0 0
  %616 = vmatpush1.bf16.msra.mxu0 0
  %617 = vmatprep.subr.bf16.mxu0 0
  %618 = vmatpush1.bf16.msra.mxu0 0
  %619 = vmatprep.subr.bf16.mxu0 0
  %620 = vmatpush1.bf16.msra.mxu0 0
  %621 = vmatprep.subr.bf16.mxu0 0
  %622 = vmatpush1.bf16.msra.mxu0 0
  %623 = vmatprep.subr.bf16.mxu0 0
  %624 = vmatpush1.bf16.msra.mxu0 0
  %625 = vmatprep.subr.bf16.mxu0 0
  %626 = vmatpush1.bf16.msra.mxu0 0
  %627 = vmatprep.mubr.bf16.mxu0 0
  %628 = vmatmul.mubr.bf16.gmra.mrb[0].mxu0 %v593
  %v629 = vpop.f32.mrb[0].mxu0
  %v630 = vadd.f32 0.0, %v629
  %v631 = vpop.f32.mrb[0].mxu0
  %v632 = vadd.f32 0.0, %v631
  %v633 = vpop.f32.mrb[0].mxu0
  %v634 = vpop.f32.mrb[0].mxu0
  %635 = vdwg.mxu0
  %v636 = vadd.f32 %v587, %v630
  %v637 = vxor.u32 %v636, 2147483648
  %v638 = vmul.f32 %v637, 1.442695
  %v639 = vpow.pop %v638
  %v640 = vadd.f32 %v639, 1.0
  %v641 = vrcp.pop %v640
  %v642 = vmul.f32 1.0, %v641
  %v643 = vmul.f32 %v642, 2.0
  %v644 = vsub.f32 %v643, 1.0
  %v645 = vmul.f32 %v642, %v580
  %647 = vrot.lane.b32.xlu0 %v644, 64
  %v648 = vpop.permute.xlu0 %647
  %v650 = vmul.f32 %v642, %v648
  %652 = vrot.lane.b32.xlu0 %v650, 32
  %v653 = vpop.permute.xlu0 %652
  %v655 = vadd.f32 %v645, %v653
  %v656 = vtanh.pop %v655
  %658 = vrot.lane.b32.xlu0 %v656, 64
  %v659 = vpop.permute.xlu0 %658
  %v661 = vmul.f32 %v642, %v659
  %663 = vrot.lane.b32.xlu0 %v661, 32
  %v664 = vpop.permute.xlu0 %663
  %666 = vst.msk [vmem:[%s9] sm:$0xff] %vm63, %v664
  %668 = vrot.lane.b32.xlu0 %v655, 96
  %v669 = vpop.permute.xlu0 %668
  %671 = vst.msk [vmem:[%s10] sm:$0xff] %vm63, %v669
  %v672 = vpack.c.bf16 %v661, %v661
  %674 = vrot.lane.b32.xlu0 %v672, 32
  %v675 = vpop.permute.xlu0 %674
  %v677 = vsel %vm63, %v675, 0
  %679 = vmatprep.subr.bf16.mxu0 %v56
  %680 = vmatpush1.bf16.msra.mxu0 %v55
  %681 = vmatprep.subr.bf16.mxu0 %v58
  %682 = vmatpush1.bf16.msra.mxu0 %v57
  %683 = vmatprep.subr.bf16.mxu0 0
  %684 = vmatpush1.bf16.msra.mxu0 0
  %685 = vmatprep.subr.bf16.mxu0 0
  %686 = vmatpush1.bf16.msra.mxu0 0
  %687 = vmatprep.subr.bf16.mxu0 0
  %688 = vmatpush1.bf16.msra.mxu0 0
  %689 = vmatprep.subr.bf16.mxu0 0
  %690 = vmatpush1.bf16.msra.mxu0 0
  %691 = vmatprep.subr.bf16.mxu0 0
  %692 = vmatpush1.bf16.msra.mxu0 0
  %693 = vmatprep.subr.bf16.mxu0 0
  %694 = vmatpush1.bf16.msra.mxu0 0
  %695 = vmatprep.subr.bf16.mxu0 0
  %696 = vmatpush1.bf16.msra.mxu0 0
  %697 = vmatprep.subr.bf16.mxu0 0
  %698 = vmatpush1.bf16.msra.mxu0 0
  %699 = vmatprep.subr.bf16.mxu0 0
  %700 = vmatpush1.bf16.msra.mxu0 0
  %701 = vmatprep.subr.bf16.mxu0 0
  %702 = vmatpush1.bf16.msra.mxu0 0
  %703 = vmatprep.subr.bf16.mxu0 0
  %704 = vmatpush1.bf16.msra.mxu0 0
  %705 = vmatprep.subr.bf16.mxu0 0
  %706 = vmatpush1.bf16.msra.mxu0 0
  %707 = vmatprep.subr.bf16.mxu0 0
  %708 = vmatpush1.bf16.msra.mxu0 0
  %709 = vmatprep.subr.bf16.mxu0 0
  %710 = vmatpush1.bf16.msra.mxu0 0
  %711 = vmatprep.mubr.bf16.mxu0 0
  %712 = vmatmul.mubr.bf16.gmra.mrb[0].mxu0 %v677
  %v713 = vpop.f32.mrb[0].mxu0
  %v714 = vpop.f32.mrb[0].mxu0
  %v715 = vadd.f32 0.0, %v714
  %v716 = vpop.f32.mrb[0].mxu0
  %v717 = vpop.f32.mrb[0].mxu0
  %718 = vdwg.mxu0
  %v719 = vld [vmem:[%s3] sm:$0x1]
  %v721 = vlaneseq
  %v722 = vshrl.u32 %v721, 7
  %v723 = vsub.s32 0, %v722
  %v724 = vrot.slane %v719, %v723
  %v726 = vadd.f32 %v182, %v724
  %v727 = vadd.f32 %v257, %v724
  %v728 = vadd.f32 %v332, %v724
  %v729 = vadd.f32 %v407, %v724
  %v730 = vadd.f32 %v482, %v724
  %v731 = vadd.f32 %v557, %v724
  %v732 = vadd.f32 %v632, %v724
  %v733 = vadd.f32 %v715, %v724
  %v734 = vld [vmem:[%s2] sm:$0xf]
  %v735 = vld [vmem:[%s2 + $0x4] sm:$0xf]
  %v736 = vld [vmem:[%s2 + $0x8] sm:$0xf]
  %v737 = vld [vmem:[%s2 + $0xc] sm:$0xf]
  %s738 = scalar_lea.vmem %s6, 8
  %v739 = vld [vmem:[%s738] sm:$0xff]
  %s740 = scalar_lea.vmem %s7, 8
  %v741 = vld [vmem:[%s740] sm:$0xff]
  %v742 = vpack.c.bf16 %v739, %v739
  %v747 = vunpack.c.l.b16 %v734
  %v748 = vunpack.c.l.b16 %v735
  %v749 = vunpack.c.l.b16 %v736
  %v750 = vunpack.c.l.b16 %v737
  %v751 = vpack.c.b16 %v748, %v747
  %v752 = vpack.c.b16 %v750, %v749
  %v756 = vsel %vm63, %v742, 0
  %758 = vmatprep.subr.bf16.mxu0 0
  %759 = vmatpush1.bf16.msra.mxu0 %v751
  %760 = vmatprep.subr.bf16.mxu0 0
  %761 = vmatpush1.bf16.msra.mxu0 %v752
  %762 = vmatprep.subr.bf16.mxu0 0
  %763 = vmatpush1.bf16.msra.mxu0 0
  %764 = vmatprep.subr.bf16.mxu0 0
  %765 = vmatpush1.bf16.msra.mxu0 0
  %766 = vmatprep.subr.bf16.mxu0 0
  %767 = vmatpush1.bf16.msra.mxu0 0
  %768 = vmatprep.subr.bf16.mxu0 0
  %769 = vmatpush1.bf16.msra.mxu0 0
  %770 = vmatprep.subr.bf16.mxu0 0
  %771 = vmatpush1.bf16.msra.mxu0 0
  %772 = vmatprep.subr.bf16.mxu0 0
  %773 = vmatpush1.bf16.msra.mxu0 0
  %774 = vmatprep.subr.bf16.mxu0 0
  %775 = vmatpush1.bf16.msra.mxu0 0
  %776 = vmatprep.subr.bf16.mxu0 0
  %777 = vmatpush1.bf16.msra.mxu0 0
  %778 = vmatprep.subr.bf16.mxu0 0
  %779 = vmatpush1.bf16.msra.mxu0 0
  %780 = vmatprep.subr.bf16.mxu0 0
  %781 = vmatpush1.bf16.msra.mxu0 0
  %782 = vmatprep.subr.bf16.mxu0 0
  %783 = vmatpush1.bf16.msra.mxu0 0
  %784 = vmatprep.subr.bf16.mxu0 0
  %785 = vmatpush1.bf16.msra.mxu0 0
  %786 = vmatprep.subr.bf16.mxu0 0
  %787 = vmatpush1.bf16.msra.mxu0 0
  %788 = vmatprep.subr.bf16.mxu0 0
  %789 = vmatpush1.bf16.msra.mxu0 0
  %790 = vmatprep.mubr.bf16.mxu0 0
  %791 = vmatmul.mubr.bf16.gmra.mrb[0].mxu0 %v756
  %v792 = vpop.f32.mrb[0].mxu0
  %v793 = vadd.f32 0.0, %v792
  %v794 = vpop.f32.mrb[0].mxu0
  %v795 = vpop.f32.mrb[0].mxu0
  %v796 = vpop.f32.mrb[0].mxu0
  %797 = vdwg.mxu0
  %v798 = vadd.f32 %v726, %v793
  %v799 = vxor.u32 %v798, 2147483648
  %v800 = vmul.f32 %v799, 1.442695
  %v801 = vpow.pop %v800
  %v802 = vadd.f32 %v801, 1.0
  %v803 = vrcp.pop %v802
  %v804 = vmul.f32 1.0, %v803
  %v805 = vmul.f32 %v804, 2.0
  %v806 = vsub.f32 %v805, 1.0
  %808 = vrot.lane.b32.xlu0 %v741, 32
  %v809 = vpop.permute.xlu0 %808
  %v811 = vmul.f32 %v804, %v809
  %813 = vrot.lane.b32.xlu0 %v806, 64
  %v814 = vpop.permute.xlu0 %813
  %v816 = vmul.f32 %v804, %v814
  %818 = vrot.lane.b32.xlu0 %v816, 32
  %v819 = vpop.permute.xlu0 %818
  %v821 = vadd.f32 %v811, %v819
  %v822 = vtanh.pop %v821
  %824 = vrot.lane.b32.xlu0 %v822, 64
  %v825 = vpop.permute.xlu0 %824
  %v827 = vmul.f32 %v804, %v825
  %v828 = vpack.c.bf16 %v827, %v827
  %830 = vrot.lane.b32.xlu0 %v828, 32
  %v831 = vpop.permute.xlu0 %830
  %v833 = vsel %vm63, %v831, 0
  %835 = vmatprep.subr.bf16.mxu0 0
  %836 = vmatpush1.bf16.msra.mxu0 %v751
  %837 = vmatprep.subr.bf16.mxu0 0
  %838 = vmatpush1.bf16.msra.mxu0 %v752
  %839 = vmatprep.subr.bf16.mxu0 0
  %840 = vmatpush1.bf16.msra.mxu0 0
  %841 = vmatprep.subr.bf16.mxu0 0
  %842 = vmatpush1.bf16.msra.mxu0 0
  %843 = vmatprep.subr.bf16.mxu0 0
  %844 = vmatpush1.bf16.msra.mxu0 0
  %845 = vmatprep.subr.bf16.mxu0 0
  %846 = vmatpush1.bf16.msra.mxu0 0
  %847 = vmatprep.subr.bf16.mxu0 0
  %848 = vmatpush1.bf16.msra.mxu0 0
  %849 = vmatprep.subr.bf16.mxu0 0
  %850 = vmatpush1.bf16.msra.mxu0 0
  %851 = vmatprep.subr.bf16.mxu0 0
  %852 = vmatpush1.bf16.msra.mxu0 0
  %853 = vmatprep.subr.bf16.mxu0 0
  %854 = vmatpush1.bf16.msra.mxu0 0
  %855 = vmatprep.subr.bf16.mxu0 0
  %856 = vmatpush1.bf16.msra.mxu0 0
  %857 = vmatprep.subr.bf16.mxu0 0
  %858 = vmatpush1.bf16.msra.mxu0 0
  %859 = vmatprep.subr.bf16.mxu0 0
  %860 = vmatpush1.bf16.msra.mxu0 0
  %861 = vmatprep.subr.bf16.mxu0 0
  %862 = vmatpush1.bf16.msra.mxu0 0
  %863 = vmatprep.subr.bf16.mxu0 0
  %864 = vmatpush1.bf16.msra.mxu0 0
  %865 = vmatprep.subr.bf16.mxu0 0
  %866 = vmatpush1.bf16.msra.mxu0 0
  %867 = vmatprep.mubr.bf16.mxu0 0
  %868 = vmatmul.mubr.bf16.gmra.mrb[0].mxu0 %v833
  %v869 = vpop.f32.mrb[0].mxu0
  %v870 = vadd.f32 0.0, %v869
  %v871 = vpop.f32.mrb[0].mxu0
  %v872 = vpop.f32.mrb[0].mxu0
  %v873 = vpop.f32.mrb[0].mxu0
  %874 = vdwg.mxu0
  %v875 = vadd.f32 %v727, %v870
  %v876 = vxor.u32 %v875, 2147483648
  %v877 = vmul.f32 %v876, 1.442695
  %v878 = vpow.pop %v877
  %v879 = vadd.f32 %v878, 1.0
  %v880 = vrcp.pop %v879
  %v881 = vmul.f32 1.0, %v880
  %v882 = vmul.f32 %v881, 2.0
  %v883 = vsub.f32 %v882, 1.0
  %v884 = vmul.f32 %v881, %v821
  %886 = vrot.lane.b32.xlu0 %v883, 64
  %v887 = vpop.permute.xlu0 %886
  %v889 = vmul.f32 %v881, %v887
  %891 = vrot.lane.b32.xlu0 %v889, 32
  %v892 = vpop.permute.xlu0 %891
  %v894 = vadd.f32 %v884, %v892
  %v895 = vtanh.pop %v894
  %897 = vrot.lane.b32.xlu0 %v895, 64
  %v898 = vpop.permute.xlu0 %897
  %v900 = vmul.f32 %v881, %v898
  %v901 = vpack.c.bf16 %v900, %v900
  %903 = vrot.lane.b32.xlu0 %v901, 32
  %v904 = vpop.permute.xlu0 %903
  %v906 = vsel %vm63, %v904, 0
  %908 = vmatprep.subr.bf16.mxu0 0
  %909 = vmatpush1.bf16.msra.mxu0 %v751
  %910 = vmatprep.subr.bf16.mxu0 0
  %911 = vmatpush1.bf16.msra.mxu0 %v752
  %912 = vmatprep.subr.bf16.mxu0 0
  %913 = vmatpush1.bf16.msra.mxu0 0
  %914 = vmatprep.subr.bf16.mxu0 0
  %915 = vmatpush1.bf16.msra.mxu0 0
  %916 = vmatprep.subr.bf16.mxu0 0
  %917 = vmatpush1.bf16.msra.mxu0 0
  %918 = vmatprep.subr.bf16.mxu0 0
  %919 = vmatpush1.bf16.msra.mxu0 0
  %920 = vmatprep.subr.bf16.mxu0 0
  %921 = vmatpush1.bf16.msra.mxu0 0
  %922 = vmatprep.subr.bf16.mxu0 0
  %923 = vmatpush1.bf16.msra.mxu0 0
  %924 = vmatprep.subr.bf16.mxu0 0
  %925 = vmatpush1.bf16.msra.mxu0 0
  %926 = vmatprep.subr.bf16.mxu0 0
  %927 = vmatpush1.bf16.msra.mxu0 0
  %928 = vmatprep.subr.bf16.mxu0 0
  %929 = vmatpush1.bf16.msra.mxu0 0
  %930 = vmatprep.subr.bf16.mxu0 0
  %931 = vmatpush1.bf16.msra.mxu0 0
  %932 = vmatprep.subr.bf16.mxu0 0
  %933 = vmatpush1.bf16.msra.mxu0 0
  %934 = vmatprep.subr.bf16.mxu0 0
  %935 = vmatpush1.bf16.msra.mxu0 0
  %936 = vmatprep.subr.bf16.mxu0 0
  %937 = vmatpush1.bf16.msra.mxu0 0
  %938 = vmatprep.subr.bf16.mxu0 0
  %939 = vmatpush1.bf16.msra.mxu0 0
  %940 = vmatprep.mubr.bf16.mxu0 0
  %941 = vmatmul.mubr.bf16.gmra.mrb[0].mxu0 %v906
  %v942 = vpop.f32.mrb[0].mxu0
  %v943 = vadd.f32 0.0, %v942
  %v944 = vpop.f32.mrb[0].mxu0
  %v945 = vpop.f32.mrb[0].mxu0
  %v946 = vpop.f32.mrb[0].mxu0
  %947 = vdwg.mxu0
  %v948 = vadd.f32 %v728, %v943
  %v949 = vxor.u32 %v948, 2147483648
  %v950 = vmul.f32 %v949, 1.442695
  %v951 = vpow.pop %v950
  %v952 = vadd.f32 %v951, 1.0
  %v953 = vrcp.pop %v952
  %v954 = vmul.f32 1.0, %v953
  %v955 = vmul.f32 %v954, 2.0
  %v956 = vsub.f32 %v955, 1.0
  %v957 = vmul.f32 %v954, %v894
  %959 = vrot.lane.b32.xlu0 %v956, 64
  %v960 = vpop.permute.xlu0 %959
  %v962 = vmul.f32 %v954, %v960
  %964 = vrot.lane.b32.xlu0 %v962, 32
  %v965 = vpop.permute.xlu0 %964
  %v967 = vadd.f32 %v957, %v965
  %v968 = vtanh.pop %v967
  %970 = vrot.lane.b32.xlu0 %v968, 64
  %v971 = vpop.permute.xlu0 %970
  %v973 = vmul.f32 %v954, %v971
  %v974 = vpack.c.bf16 %v973, %v973
  %976 = vrot.lane.b32.xlu0 %v974, 32
  %v977 = vpop.permute.xlu0 %976
  %v979 = vsel %vm63, %v977, 0
  %981 = vmatprep.subr.bf16.mxu0 0
  %982 = vmatpush1.bf16.msra.mxu0 %v751
  %983 = vmatprep.subr.bf16.mxu0 0
  %984 = vmatpush1.bf16.msra.mxu0 %v752
  %985 = vmatprep.subr.bf16.mxu0 0
  %986 = vmatpush1.bf16.msra.mxu0 0
  %987 = vmatprep.subr.bf16.mxu0 0
  %988 = vmatpush1.bf16.msra.mxu0 0
  %989 = vmatprep.subr.bf16.mxu0 0
  %990 = vmatpush1.bf16.msra.mxu0 0
  %991 = vmatprep.subr.bf16.mxu0 0
  %992 = vmatpush1.bf16.msra.mxu0 0
  %993 = vmatprep.subr.bf16.mxu0 0
  %994 = vmatpush1.bf16.msra.mxu0 0
  %995 = vmatprep.subr.bf16.mxu0 0
  %996 = vmatpush1.bf16.msra.mxu0 0
  %997 = vmatprep.subr.bf16.mxu0 0
  %998 = vmatpush1.bf16.msra.mxu0 0
  %999 = vmatprep.subr.bf16.mxu0 0
  %1000 = vmatpush1.bf16.msra.mxu0 0
  %1001 = vmatprep.subr.bf16.mxu0 0
  %1002 = vmatpush1.bf16.msra.mxu0 0
  %1003 = vmatprep.subr.bf16.mxu0 0
  %1004 = vmatpush1.bf16.msra.mxu0 0
  %1005 = vmatprep.subr.bf16.mxu0 0
  %1006 = vmatpush1.bf16.msra.mxu0 0
  %1007 = vmatprep.subr.bf16.mxu0 0
  %1008 = vmatpush1.bf16.msra.mxu0 0
  %1009 = vmatprep.subr.bf16.mxu0 0
  %1010 = vmatpush1.bf16.msra.mxu0 0
  %1011 = vmatprep.subr.bf16.mxu0 0
  %1012 = vmatpush1.bf16.msra.mxu0 0
  %1013 = vmatprep.mubr.bf16.mxu0 0
  %1014 = vmatmul.mubr.bf16.gmra.mrb[0].mxu0 %v979
  %v1015 = vpop.f32.mrb[0].mxu0
  %v1016 = vadd.f32 0.0, %v1015
  %v1017 = vpop.f32.mrb[0].mxu0
  %v1018 = vpop.f32.mrb[0].mxu0
  %v1019 = vpop.f32.mrb[0].mxu0
  %1020 = vdwg.mxu0
  %v1021 = vadd.f32 %v729, %v1016
  %v1022 = vxor.u32 %v1021, 2147483648
  %v1023 = vmul.f32 %v1022, 1.442695
  %v1024 = vpow.pop %v1023
  %v1025 = vadd.f32 %v1024, 1.0
  %v1026 = vrcp.pop %v1025
  %v1027 = vmul.f32 1.0, %v1026
  %v1028 = vmul.f32 %v1027, 2.0
  %v1029 = vsub.f32 %v1028, 1.0
  %v1030 = vmul.f32 %v1027, %v967
  %1032 = vrot.lane.b32.xlu0 %v1029, 64
  %v1033 = vpop.permute.xlu0 %1032
  %v1035 = vmul.f32 %v1027, %v1033
  %1037 = vrot.lane.b32.xlu0 %v1035, 32
  %v1038 = vpop.permute.xlu0 %1037
  %v1040 = vadd.f32 %v1030, %v1038
  %v1041 = vtanh.pop %v1040
  %1043 = vrot.lane.b32.xlu0 %v1041, 64
  %v1044 = vpop.permute.xlu0 %1043
  %v1046 = vmul.f32 %v1027, %v1044
  %v1047 = vpack.c.bf16 %v1046, %v1046
  %1049 = vrot.lane.b32.xlu0 %v1047, 32
  %v1050 = vpop.permute.xlu0 %1049
  %v1052 = vsel %vm63, %v1050, 0
  %1054 = vmatprep.subr.bf16.mxu0 0
  %1055 = vmatpush1.bf16.msra.mxu0 %v751
  %1056 = vmatprep.subr.bf16.mxu0 0
  %1057 = vmatpush1.bf16.msra.mxu0 %v752
  %1058 = vmatprep.subr.bf16.mxu0 0
  %1059 = vmatpush1.bf16.msra.mxu0 0
  %1060 = vmatprep.subr.bf16.mxu0 0
  %1061 = vmatpush1.bf16.msra.mxu0 0
  %1062 = vmatprep.subr.bf16.mxu0 0
  %1063 = vmatpush1.bf16.msra.mxu0 0
  %1064 = vmatprep.subr.bf16.mxu0 0
  %1065 = vmatpush1.bf16.msra.mxu0 0
  %1066 = vmatprep.subr.bf16.mxu0 0
  %1067 = vmatpush1.bf16.msra.mxu0 0
  %1068 = vmatprep.subr.bf16.mxu0 0
  %1069 = vmatpush1.bf16.msra.mxu0 0
  %1070 = vmatprep.subr.bf16.mxu0 0
  %1071 = vmatpush1.bf16.msra.mxu0 0
  %1072 = vmatprep.subr.bf16.mxu0 0
  %1073 = vmatpush1.bf16.msra.mxu0 0
  %1074 = vmatprep.subr.bf16.mxu0 0
  %1075 = vmatpush1.bf16.msra.mxu0 0
  %1076 = vmatprep.subr.bf16.mxu0 0
  %1077 = vmatpush1.bf16.msra.mxu0 0
  %1078 = vmatprep.subr.bf16.mxu0 0
  %1079 = vmatpush1.bf16.msra.mxu0 0
  %1080 = vmatprep.subr.bf16.mxu0 0
  %1081 = vmatpush1.bf16.msra.mxu0 0
  %1082 = vmatprep.subr.bf16.mxu0 0
  %1083 = vmatpush1.bf16.msra.mxu0 0
  %1084 = vmatprep.subr.bf16.mxu0 0
  %1085 = vmatpush1.bf16.msra.mxu0 0
  %1086 = vmatprep.mubr.bf16.mxu0 0
  %1087 = vmatmul.mubr.bf16.gmra.mrb[0].mxu0 %v1052
  %v1088 = vpop.f32.mrb[0].mxu0
  %v1089 = vadd.f32 0.0, %v1088
  %v1090 = vpop.f32.mrb[0].mxu0
  %v1091 = vpop.f32.mrb[0].mxu0
  %v1092 = vpop.f32.mrb[0].mxu0
  %1093 = vdwg.mxu0
  %v1094 = vadd.f32 %v730, %v1089
  %v1095 = vxor.u32 %v1094, 2147483648
  %v1096 = vmul.f32 %v1095, 1.442695
  %v1097 = vpow.pop %v1096
  %v1098 = vadd.f32 %v1097, 1.0
  %v1099 = vrcp.pop %v1098
  %v1100 = vmul.f32 1.0, %v1099
  %v1101 = vmul.f32 %v1100, 2.0
  %v1102 = vsub.f32 %v1101, 1.0
  %v1103 = vmul.f32 %v1100, %v1040
  %1105 = vrot.lane.b32.xlu0 %v1102, 64
  %v1106 = vpop.permute.xlu0 %1105
  %v1108 = vmul.f32 %v1100, %v1106
  %1110 = vrot.lane.b32.xlu0 %v1108, 32
  %v1111 = vpop.permute.xlu0 %1110
  %v1113 = vadd.f32 %v1103, %v1111
  %v1114 = vtanh.pop %v1113
  %1116 = vrot.lane.b32.xlu0 %v1114, 64
  %v1117 = vpop.permute.xlu0 %1116
  %v1119 = vmul.f32 %v1100, %v1117
  %v1120 = vpack.c.bf16 %v1119, %v1119
  %1122 = vrot.lane.b32.xlu0 %v1120, 32
  %v1123 = vpop.permute.xlu0 %1122
  %v1125 = vsel %vm63, %v1123, 0
  %1127 = vmatprep.subr.bf16.mxu0 0
  %1128 = vmatpush1.bf16.msra.mxu0 %v751
  %1129 = vmatprep.subr.bf16.mxu0 0
  %1130 = vmatpush1.bf16.msra.mxu0 %v752
  %1131 = vmatprep.subr.bf16.mxu0 0
  %1132 = vmatpush1.bf16.msra.mxu0 0
  %1133 = vmatprep.subr.bf16.mxu0 0
  %1134 = vmatpush1.bf16.msra.mxu0 0
  %1135 = vmatprep.subr.bf16.mxu0 0
  %1136 = vmatpush1.bf16.msra.mxu0 0
  %1137 = vmatprep.subr.bf16.mxu0 0
  %1138 = vmatpush1.bf16.msra.mxu0 0
  %1139 = vmatprep.subr.bf16.mxu0 0
  %1140 = vmatpush1.bf16.msra.mxu0 0
  %1141 = vmatprep.subr.bf16.mxu0 0
  %1142 = vmatpush1.bf16.msra.mxu0 0
  %1143 = vmatprep.subr.bf16.mxu0 0
  %1144 = vmatpush1.bf16.msra.mxu0 0
  %1145 = vmatprep.subr.bf16.mxu0 0
  %1146 = vmatpush1.bf16.msra.mxu0 0
  %1147 = vmatprep.subr.bf16.mxu0 0
  %1148 = vmatpush1.bf16.msra.mxu0 0
  %1149 = vmatprep.subr.bf16.mxu0 0
  %1150 = vmatpush1.bf16.msra.mxu0 0
  %1151 = vmatprep.subr.bf16.mxu0 0
  %1152 = vmatpush1.bf16.msra.mxu0 0
  %1153 = vmatprep.subr.bf16.mxu0 0
  %1154 = vmatpush1.bf16.msra.mxu0 0
  %1155 = vmatprep.subr.bf16.mxu0 0
  %1156 = vmatpush1.bf16.msra.mxu0 0
  %1157 = vmatprep.subr.bf16.mxu0 0
  %1158 = vmatpush1.bf16.msra.mxu0 0
  %1159 = vmatprep.mubr.bf16.mxu0 0
  %1160 = vmatmul.mubr.bf16.gmra.mrb[0].mxu0 %v1125
  %v1161 = vpop.f32.mrb[0].mxu0
  %v1162 = vadd.f32 0.0, %v1161
  %v1163 = vpop.f32.mrb[0].mxu0
  %v1164 = vpop.f32.mrb[0].mxu0
  %v1165 = vpop.f32.mrb[0].mxu0
  %1166 = vdwg.mxu0
  %v1167 = vadd.f32 %v731, %v1162
  %v1168 = vxor.u32 %v1167, 2147483648
  %v1169 = vmul.f32 %v1168, 1.442695
  %v1170 = vpow.pop %v1169
  %v1171 = vadd.f32 %v1170, 1.0
  %v1172 = vrcp.pop %v1171
  %v1173 = vmul.f32 1.0, %v1172
  %v1174 = vmul.f32 %v1173, 2.0
  %v1175 = vsub.f32 %v1174, 1.0
  %v1176 = vmul.f32 %v1173, %v1113
  %1178 = vrot.lane.b32.xlu0 %v1175, 64
  %v1179 = vpop.permute.xlu0 %1178
  %v1181 = vmul.f32 %v1173, %v1179
  %1183 = vrot.lane.b32.xlu0 %v1181, 32
  %v1184 = vpop.permute.xlu0 %1183
  %v1186 = vadd.f32 %v1176, %v1184
  %v1187 = vtanh.pop %v1186
  %1189 = vrot.lane.b32.xlu0 %v1187, 64
  %v1190 = vpop.permute.xlu0 %1189
  %v1192 = vmul.f32 %v1173, %v1190
  %v1193 = vpack.c.bf16 %v1192, %v1192
  %1195 = vrot.lane.b32.xlu0 %v1193, 32
  %v1196 = vpop.permute.xlu0 %1195
  %v1198 = vsel %vm63, %v1196, 0
  %1200 = vmatprep.subr.bf16.mxu0 0
  %1201 = vmatpush1.bf16.msra.mxu0 %v751
  %1202 = vmatprep.subr.bf16.mxu0 0
  %1203 = vmatpush1.bf16.msra.mxu0 %v752
  %1204 = vmatprep.subr.bf16.mxu0 0
  %1205 = vmatpush1.bf16.msra.mxu0 0
  %1206 = vmatprep.subr.bf16.mxu0 0
  %1207 = vmatpush1.bf16.msra.mxu0 0
  %1208 = vmatprep.subr.bf16.mxu0 0
  %1209 = vmatpush1.bf16.msra.mxu0 0
  %1210 = vmatprep.subr.bf16.mxu0 0
  %1211 = vmatpush1.bf16.msra.mxu0 0
  %1212 = vmatprep.subr.bf16.mxu0 0
  %1213 = vmatpush1.bf16.msra.mxu0 0
  %1214 = vmatprep.subr.bf16.mxu0 0
  %1215 = vmatpush1.bf16.msra.mxu0 0
  %1216 = vmatprep.subr.bf16.mxu0 0
  %1217 = vmatpush1.bf16.msra.mxu0 0
  %1218 = vmatprep.subr.bf16.mxu0 0
  %1219 = vmatpush1.bf16.msra.mxu0 0
  %1220 = vmatprep.subr.bf16.mxu0 0
  %1221 = vmatpush1.bf16.msra.mxu0 0
  %1222 = vmatprep.subr.bf16.mxu0 0
  %1223 = vmatpush1.bf16.msra.mxu0 0
  %1224 = vmatprep.subr.bf16.mxu0 0
  %1225 = vmatpush1.bf16.msra.mxu0 0
  %1226 = vmatprep.subr.bf16.mxu0 0
  %1227 = vmatpush1.bf16.msra.mxu0 0
  %1228 = vmatprep.subr.bf16.mxu0 0
  %1229 = vmatpush1.bf16.msra.mxu0 0
  %1230 = vmatprep.subr.bf16.mxu0 0
  %1231 = vmatpush1.bf16.msra.mxu0 0
  %1232 = vmatprep.mubr.bf16.mxu0 0
  %1233 = vmatmul.mubr.bf16.gmra.mrb[0].mxu0 %v1198
  %v1234 = vpop.f32.mrb[0].mxu0
  %v1235 = vadd.f32 0.0, %v1234
  %v1236 = vpop.f32.mrb[0].mxu0
  %v1237 = vpop.f32.mrb[0].mxu0
  %v1238 = vpop.f32.mrb[0].mxu0
  %1239 = vdwg.mxu0
  %v1240 = vadd.f32 %v732, %v1235
  %v1241 = vxor.u32 %v1240, 2147483648
  %v1242 = vmul.f32 %v1241, 1.442695
  %v1243 = vpow.pop %v1242
  %v1244 = vadd.f32 %v1243, 1.0
  %v1245 = vrcp.pop %v1244
  %v1246 = vmul.f32 1.0, %v1245
  %v1247 = vmul.f32 %v1246, 2.0
  %v1248 = vsub.f32 %v1247, 1.0
  %v1249 = vmul.f32 %v1246, %v1186
  %1251 = vrot.lane.b32.xlu0 %v1248, 64
  %v1252 = vpop.permute.xlu0 %1251
  %v1254 = vmul.f32 %v1246, %v1252
  %1256 = vrot.lane.b32.xlu0 %v1254, 32
  %v1257 = vpop.permute.xlu0 %1256
  %v1259 = vadd.f32 %v1249, %v1257
  %v1260 = vtanh.pop %v1259
  %1262 = vrot.lane.b32.xlu0 %v1260, 64
  %v1263 = vpop.permute.xlu0 %1262
  %v1265 = vmul.f32 %v1246, %v1263
  %v1266 = vpack.c.bf16 %v1265, %v1265
  %1268 = vrot.lane.b32.xlu0 %v1266, 32
  %v1269 = vpop.permute.xlu0 %1268
  %v1271 = vsel %vm63, %v1269, 0
  %1273 = vmatprep.subr.bf16.mxu0 0
  %1274 = vmatpush1.bf16.msra.mxu0 %v751
  %1275 = vmatprep.subr.bf16.mxu0 0
  %1276 = vmatpush1.bf16.msra.mxu0 %v752
  %1277 = vmatprep.subr.bf16.mxu0 0
  %1278 = vmatpush1.bf16.msra.mxu0 0
  %1279 = vmatprep.subr.bf16.mxu0 0
  %1280 = vmatpush1.bf16.msra.mxu0 0
  %1281 = vmatprep.subr.bf16.mxu0 0
  %1282 = vmatpush1.bf16.msra.mxu0 0
  %1283 = vmatprep.subr.bf16.mxu0 0
  %1284 = vmatpush1.bf16.msra.mxu0 0
  %1285 = vmatprep.subr.bf16.mxu0 0
  %1286 = vmatpush1.bf16.msra.mxu0 0
  %1287 = vmatprep.subr.bf16.mxu0 0
  %1288 = vmatpush1.bf16.msra.mxu0 0
  %1289 = vmatprep.subr.bf16.mxu0 0
  %1290 = vmatpush1.bf16.msra.mxu0 0
  %1291 = vmatprep.subr.bf16.mxu0 0
  %1292 = vmatpush1.bf16.msra.mxu0 0
  %1293 = vmatprep.subr.bf16.mxu0 0
  %1294 = vmatpush1.bf16.msra.mxu0 0
  %1295 = vmatprep.subr.bf16.mxu0 0
  %1296 = vmatpush1.bf16.msra.mxu0 0
  %1297 = vmatprep.subr.bf16.mxu0 0
  %1298 = vmatpush1.bf16.msra.mxu0 0
  %1299 = vmatprep.subr.bf16.mxu0 0
  %1300 = vmatpush1.bf16.msra.mxu0 0
  %1301 = vmatprep.subr.bf16.mxu0 0
  %1302 = vmatpush1.bf16.msra.mxu0 0
  %1303 = vmatprep.subr.bf16.mxu0 0
  %1304 = vmatpush1.bf16.msra.mxu0 0
  %1305 = vmatprep.mubr.bf16.mxu0 0
  %1306 = vmatmul.mubr.bf16.gmra.mrb[0].mxu0 %v1271
  %v1307 = vpop.f32.mrb[0].mxu0
  %v1308 = vadd.f32 0.0, %v1307
  %v1309 = vpop.f32.mrb[0].mxu0
  %v1310 = vpop.f32.mrb[0].mxu0
  %v1311 = vpop.f32.mrb[0].mxu0
  %1312 = vdwg.mxu0
  %v1313 = vadd.f32 %v733, %v1308
  %v1314 = vxor.u32 %v1313, 2147483648
  %v1315 = vmul.f32 %v1314, 1.442695
  %v1316 = vpow.pop %v1315
  %v1317 = vadd.f32 %v1316, 1.0
  %v1318 = vrcp.pop %v1317
  %v1319 = vmul.f32 1.0, %v1318
  %v1320 = vmul.f32 %v1319, 2.0
  %v1321 = vsub.f32 %v1320, 1.0
  %v1322 = vmul.f32 %v1319, %v1259
  %1324 = vrot.lane.b32.xlu0 %v1321, 64
  %v1325 = vpop.permute.xlu0 %1324
  %v1327 = vmul.f32 %v1319, %v1325
  %1329 = vrot.lane.b32.xlu0 %v1327, 32
  %v1330 = vpop.permute.xlu0 %1329
  %v1332 = vadd.f32 %v1322, %v1330
  %v1333 = vtanh.pop %v1332
  %1335 = vrot.lane.b32.xlu0 %v1333, 64
  %v1336 = vpop.permute.xlu0 %1335
  %v1338 = vmul.f32 %v1319, %v1336
  %1340 = vrot.lane.b32.xlu0 %v1338, 32
  %v1341 = vpop.permute.xlu0 %1340
  %s1343 = scalar_lea.vmem %s9, 8
  %1344 = vst.msk [vmem:[%s1343] sm:$0xff] %vm63, %v1341
  %1346 = vrot.lane.b32.xlu0 %v1332, 96
  %v1347 = vpop.permute.xlu0 %1346
  %s1349 = scalar_lea.vmem %s10, 8
  %1350 = vst.msk [vmem:[%s1349] sm:$0xff] %vm63, %v1347
  %v1351 = vld [vmem:[%s4] sm:$0xff]
  %v1352 = vld [vmem:[%s4 + $0x8] sm:$0xff]
  %v1353 = vld [vmem:[%s4 + $0x10] sm:$0xff]
  %v1354 = vld [vmem:[%s4 + $0x18] sm:$0xff]
  %v1355 = vld [vmem:[#allocation2] sm:$0x1]
  %v1357 = vlaneseq
  %v1358 = vshrl.u32 %v1357, 7
  %v1359 = vsub.s32 0, %v1358
  %v1360 = vrot.slane %v1355, %v1359
  %v1362 = vsel %vm63, %v1341, 0
  %1364 = vmatprep.subr.mxu0 0.0
  %1365 = vmatpush1.msra.mxu0 %v1351
  %1366 = vmatprep.subr.mxu0 0.0
  %1367 = vmatpush1.msra.mxu0 %v1352
  %1368 = vmatprep.subr.mxu0 0.0
  %1369 = vmatpush1.msra.mxu0 %v1353
  %1370 = vmatprep.subr.mxu0 0.0
  %1371 = vmatpush1.msra.mxu0 %v1354
  %1372 = vmatprep.subr.mxu0 0.0
  %1373 = vmatpush1.msra.mxu0 0.0
  %1374 = vmatprep.subr.mxu0 0.0
  %1375 = vmatpush1.msra.mxu0 0.0
  %1376 = vmatprep.subr.mxu0 0.0
  %1377 = vmatpush1.msra.mxu0 0.0
  %1378 = vmatprep.subr.mxu0 0.0
  %1379 = vmatpush1.msra.mxu0 0.0
  %1380 = vmatprep.subr.mxu0 0.0
  %1381 = vmatpush1.msra.mxu0 0.0
  %1382 = vmatprep.subr.mxu0 0.0
  %1383 = vmatpush1.msra.mxu0 0.0
  %1384 = vmatprep.subr.mxu0 0.0
  %1385 = vmatpush1.msra.mxu0 0.0
  %1386 = vmatprep.subr.mxu0 0.0
  %1387 = vmatpush1.msra.mxu0 0.0
  %1388 = vmatprep.subr.mxu0 0.0
  %1389 = vmatpush1.msra.mxu0 0.0
  %1390 = vmatprep.subr.mxu0 0.0
  %1391 = vmatpush1.msra.mxu0 0.0
  %1392 = vmatprep.subr.mxu0 0.0
  %1393 = vmatpush1.msra.mxu0 0.0
  %1394 = vmatprep.subr.mxu0 0.0
  %1395 = vmatpush1.msra.mxu0 0.0
  %1396 = vmatprep.subr.mxu0 0.0
  %1397 = vmatpush1.msra.mxu0 0.0
  %1398 = vmatprep.subr.mxu0 0.0
  %1399 = vmatpush1.msra.mxu0 0.0
  %1400 = vmatprep.subr.mxu0 0.0
  %1401 = vmatpush1.msra.mxu0 0.0
  %1402 = vmatprep.subr.mxu0 0.0
  %1403 = vmatpush1.msra.mxu0 0.0
  %1404 = vmatprep.subr.mxu0 0.0
  %1405 = vmatpush1.msra.mxu0 0.0
  %1406 = vmatprep.subr.mxu0 0.0
  %1407 = vmatpush1.msra.mxu0 0.0
  %1408 = vmatprep.subr.mxu0 0.0
  %1409 = vmatpush1.msra.mxu0 0.0
  %1410 = vmatprep.subr.mxu0 0.0
  %1411 = vmatpush1.msra.mxu0 0.0
  %1412 = vmatprep.subr.mxu0 0.0
  %1413 = vmatpush1.msra.mxu0 0.0
  %1414 = vmatprep.subr.mxu0 0.0
  %1415 = vmatpush1.msra.mxu0 0.0
  %1416 = vmatprep.subr.mxu0 0.0
  %1417 = vmatpush1.msra.mxu0 0.0
  %1418 = vmatprep.subr.mxu0 0.0
  %1419 = vmatpush1.msra.mxu0 0.0
  %1420 = vmatprep.subr.mxu0 0.0
  %1421 = vmatpush1.msra.mxu0 0.0
  %1422 = vmatprep.subr.mxu0 0.0
  %1423 = vmatpush1.msra.mxu0 0.0
  %1424 = vmatprep.subr.mxu0 0.0
  %1425 = vmatpush1.msra.mxu0 0.0
  %1426 = vmatprep.subr.mxu0 0.0
  %1427 = vmatpush1.msra.mxu0 0.0
  %1428 = vmatprep.mubr.f32.mxu0 0.0
  %1429 = vmatmul.mubr.f32.gmra.mrb[0].mxu0 %v1362
  %v1430 = vpop.f32.mrb[0].mxu0
  %v1431 = vadd.f32 %v1360, %v1430
  %v1432 = vpop.f32.mrb[0].mxu0
  %1433 = vdwg.mxu0
  %v1434 = vxor.u32 %v1431, 2147483648
  %v1435 = vmul.f32 %v1434, 1.442695
  %v1436 = vpow.pop %v1435
  %v1437 = vadd.f32 %v1436, 1.0
  %v1438 = vrcp.pop %v1437
  %v1439 = vmul.f32 1.0, %v1438
  %vm1440 = vcmask 7168
  %1441 = vst.msk [vmem:[%s8] sm:$0xff] %vm1440, %v1439
  // Predicated region
  $region34: #{senti_lstm_forward.1} parent=0 // pred_check
    _
  $region35: #{senti_lstm_forward.1} parent=0 // pred_check_branch
    %1443 = sbr.rel (0) target = $region37
  $region36: #{senti_lstm_forward.1} parent=0 // pred_region
    _
  $region37: #{senti_lstm_forward.1} parent=0 // pred_fallthru
    _
  // Predicated region
  $region38: #{senti_lstm_forward.1} parent=0 // pred_check
    _
  $region39: #{senti_lstm_forward.1} parent=0 // pred_check_branch
    %1445 = sbr.rel (0) target = $region41
  $region40: #{senti_lstm_forward.1} parent=0 // pred_region
    _
  $region41: #{senti_lstm_forward.1} parent=0 // pred_fallthru
    _
  // Predicated region
  $region42: #{senti_lstm_forward.1} parent=0 // pred_check
    _
  $region43: #{senti_lstm_forward.1} parent=0 // pred_check_branch
    %1447 = sbr.rel (0) target = $region45
  $region44: #{senti_lstm_forward.1} parent=0 // pred_region
    _
  $region45: #{senti_lstm_forward.1} parent=0 // pred_fallthru
    _
  // Predicated region
  $region46: #{senti_lstm_forward.1} parent=0 // pred_check
    _
  $region47: #{senti_lstm_forward.1} parent=0 // pred_check_branch
    %1449 = sbr.rel (0) target = $region49
  $region48: #{senti_lstm_forward.1} parent=0 // pred_region
    _
  $region49: #{senti_lstm_forward.1} parent=0 // pred_fallthru
    _
  // Predicated region
  $region50: #{senti_lstm_forward.1} parent=0 // pred_check
    _
  $region51: #{senti_lstm_forward.1} parent=0 // pred_check_branch
    %1451 = sbr.rel (0) target = $region53
  $region52: #{senti_lstm_forward.1} parent=0 // pred_region
    _
  $region53: #{senti_lstm_forward.1} parent=0 // pred_fallthru
    _
  // Predicated region
  $region54: #{senti_lstm_forward.1} parent=0 // pred_check
    _
  $region55: #{senti_lstm_forward.1} parent=0 // pred_check_branch
    %1453 = sbr.rel (0) target = $region57
  $region56: #{senti_lstm_forward.1} parent=0 // pred_region
    _
  $region57: #{senti_lstm_forward.1} parent=0 // pred_fallthru
    _

</llo_original>
